<compile_context>
chip_gen: v6e
topology: v6e:2x2x1
jax: 0.10.0
libtpu: 0.0.40
codegen_flags: <defaults>
</compile_context>

<pallas_src>
import jax
import jax.numpy as jnp
from jax.experimental import pallas as pl
from jax.experimental.pallas import tpu as pltpu


# ----------------------------------------------------------------------------
# Pallas kernel: everything downstream of the ResNet50 backbone.
# ----------------------------------------------------------------------------
def itm_head_kernel(
    feat_ref,                      # (tile_b, 2048) bf16 pooled backbone features
    q_ref,                         # (tile_b, 768)  bf16 question embedding
    a_ref,                         # (tile_b, 768)  bf16 answer embedding
    img_w_ref, img_b_ref,          # (2048, 128) bf16, (1, 128) f32  [folded cnn.fc @ fc_cnn_attention]
    q_w_ref, q_b_ref,              # (768, 128)  bf16, (1, 128) f32
    a_w_ref, a_b_ref,              # (768, 128)  bf16, (1, 128) f32
    fc_w_img_ref,                  # (128, nc)   bf16  [rows   0:128 of ITM_Model.fc]
    fc_w_q_ref,                    # (128, nc)   bf16  [rows 128:256]
    fc_w_a_ref,                    # (128, nc)   bf16  [rows 256:384]
    fc_b_ref,                      # (1, nc)     f32
    out_ref,                       # (tile_b, nc) f32
):
    # Image branch (attention softmax over dim=1 of (B,1) == 1.0, so it is a no-op;
    # cnn.fc and fc_cnn_attention are pre-folded into img_w/img_b).
    img_f = (
        jnp.dot(feat_ref[...], img_w_ref[...], preferred_element_type=jnp.float32)
        + img_b_ref[...]
    )

    # Question / answer embedding layers.
    q_f = (
        jnp.dot(q_ref[...], q_w_ref[...], preferred_element_type=jnp.float32)
        + q_b_ref[...]
    )
    a_f = (
        jnp.dot(a_ref[...], a_w_ref[...], preferred_element_type=jnp.float32)
        + a_b_ref[...]
    )

    # Final classifier: concat(img, q, a) @ fc_w + fc_b, expressed as three
    # partial matmuls so no (B, 384) concat is ever materialized.
    out = (
        jnp.dot(img_f.astype(jnp.bfloat16), fc_w_img_ref[...],
                preferred_element_type=jnp.float32)
        + jnp.dot(q_f.astype(jnp.bfloat16), fc_w_q_ref[...],
                  preferred_element_type=jnp.float32)
        + jnp.dot(a_f.astype(jnp.bfloat16), fc_w_a_ref[...],
                  preferred_element_type=jnp.float32)
        + fc_b_ref[...]
    )
    out_ref[...] = out


# ----------------------------------------------------------------------------
# Parameter preprocessing (fold linears, split final fc, cast to bf16)
# ----------------------------------------------------------------------------
def preprocess_params(params, dtype=jnp.bfloat16):
    # dropout is identity at eval, so cnn.fc followed by fc_cnn_attention folds
    # into a single affine map:  W = cnn_fc_w @ fca_w,  b = cnn_fc_b @ fca_w + fca_b
    img_w = params["cnn_fc_w"] @ params["fca_w"]                      # (2048, 128)
    img_b = params["cnn_fc_b"] @ params["fca_w"] + params["fca_b"]    # (1, 128)
    fc_w = params["fc_w"]                                             # (384, nc)
    return {
        "img_w": img_w.astype(dtype),
        "img_b": img_b.astype(jnp.float32),
        "q_w": params["q_w"].astype(dtype),
        "q_b": params["q_b"].astype(jnp.float32),
        "a_w": params["a_w"].astype(dtype),
        "a_b": params["a_b"].astype(jnp.float32),
        "fc_w_img": fc_w[0:128, :].astype(dtype),
        "fc_w_q": fc_w[128:256, :].astype(dtype),
        "fc_w_a": fc_w[256:384, :].astype(dtype),
        "fc_b": params["fc_b"].astype(jnp.float32),
    }


# ----------------------------------------------------------------------------
# Wrapper
# ----------------------------------------------------------------------------
def itm_forward(feat, q_emb, a_emb, pp, *, tile_b=None):
    B = feat.shape[0]
    nc = pp["fc_w_img"].shape[1]

    if tile_b is None:
        tile_b = B if B <= 128 else 128
    assert B % tile_b == 0 and tile_b % 8 == 0, "batch must tile in multiples of 8"

    feat = feat.astype(jnp.bfloat16)
    q_emb = q_emb.astype(jnp.bfloat16)
    a_emb = a_emb.astype(jnp.bfloat16)

    grid = (B // tile_b,)

    def batch_spec(d):
        # Activations: tiled along the batch axis.
        return pl.BlockSpec((tile_b, d), lambda i: (i, 0))

    def resident_spec(arr):
        # Weights/biases: same block for every grid step -> stay VMEM-resident.
        return pl.BlockSpec(arr.shape, lambda i: (0, 0))

    weights = (
        pp["img_w"], pp["img_b"],
        pp["q_w"], pp["q_b"],
        pp["a_w"], pp["a_b"],
        pp["fc_w_img"], pp["fc_w_q"], pp["fc_w_a"], pp["fc_b"],
    )

    in_specs = [
        batch_spec(feat.shape[1]),
        batch_spec(q_emb.shape[1]),
        batch_spec(a_emb.shape[1]),
    ] + [resident_spec(w) for w in weights]

    out_specs = pl.BlockSpec((tile_b, nc), lambda i: (i, 0))

    return pl.pallas_call(
        itm_head_kernel,
        out_shape=jax.ShapeDtypeStruct((B, nc), jnp.float32),
        grid=grid,
        in_specs=in_specs,
        out_specs=out_specs,
        compiler_params=pltpu.CompilerParams(
            dimension_semantics=("parallel",),
            vmem_limit_bytes=16 << 20,   # actual footprint ~2 MiB; leave headroom only
        ),
    )(feat, q_emb, a_emb, *weights)


# ----------------------------------------------------------------------------
# Deterministic parameter init (shapes from ITM_Model.__init__ / CNN_Attention)
# ----------------------------------------------------------------------------
def init_params(key, num_classes=2, scale=0.02):
    ks = jax.random.split(key, 8)

    def lin(k, fan_in, fan_out):
        kw, kb = jax.random.split(k)
        w = scale * jax.random.normal(kw, (fan_in, fan_out), jnp.float32)
        b = scale * jax.random.normal(kb, (1, fan_out), jnp.float32)
        return w, b

    p = {}
    p["attn_w1"], p["attn_b1"] = lin(ks[0], 2048, 512)    # attention[0]
    p["attn_w2"], p["attn_b2"] = lin(ks[1], 512, 1)       # attention[2]
    p["cnn_fc_w"], p["cnn_fc_b"] = lin(ks[2], 2048, 128)  # CNN_Attention.fc
    p["fca_w"], p["fca_b"] = lin(ks[3], 128, 128)         # fc_cnn_attention
    p["q_w"], p["q_b"] = lin(ks[4], 768, 128)             # question_embedding_layer
    p["a_w"], p["a_b"] = lin(ks[5], 768, 128)             # answer_embedding_layer
    p["fc_w"], p["fc_b"] = lin(ks[6], 384, num_classes)   # ITM_Model.fc
    return p


# Pure-JAX f32 reference of the ORIGINAL module semantics (attention branch,
# two-step image linears, concat) -- used for the semantic check.
def itm_reference_full(feat, q_emb, a_emb, p):
    h = jnp.tanh(feat @ p["attn_w1"] + p["attn_b1"])
    s = h @ p["attn_w2"] + p["attn_b2"]
    attn = jax.nn.softmax(s, axis=1)                      # (B,1) -> exactly 1.0
    img_f = (feat * attn) @ p["cnn_fc_w"] + p["cnn_fc_b"]
    img_f = img_f @ p["fca_w"] + p["fca_b"]               # dropout = identity (eval)
    q_f = q_emb @ p["q_w"] + p["q_b"]
    a_f = a_emb @ p["a_w"] + p["a_b"]
    combined = jnp.concatenate([img_f, q_f, a_f], axis=1)
    return combined @ p["fc_w"] + p["fc_b"]


# Pure-JAX reference of the exact preprocessed/bf16 computation the kernel does
# (tight numerical check of the kernel itself).
def itm_reference_preprocessed(feat, q_emb, a_emb, pp):
    feat = feat.astype(jnp.bfloat16)
    q_emb = q_emb.astype(jnp.bfloat16)
    a_emb = a_emb.astype(jnp.bfloat16)
    img_f = jnp.dot(feat, pp["img_w"], preferred_element_type=jnp.float32) + pp["img_b"]
    q_f = jnp.dot(q_emb, pp["q_w"], preferred_element_type=jnp.float32) + pp["q_b"]
    a_f = jnp.dot(a_emb, pp["a_w"], preferred_element_type=jnp.float32) + pp["a_b"]
    return (
        jnp.dot(img_f.astype(jnp.bfloat16), pp["fc_w_img"], preferred_element_type=jnp.float32)
        + jnp.dot(q_f.astype(jnp.bfloat16), pp["fc_w_q"], preferred_element_type=jnp.float32)
        + jnp.dot(a_f.astype(jnp.bfloat16), pp["fc_w_a"], preferred_element_type=jnp.float32)
        + pp["fc_b"]
    )


if __name__ == "__main__":
    key = jax.random.PRNGKey(0)
    k_feat, k_q, k_a, k_p = jax.random.split(key, 4)

    B = 8  # small batch; feature dims (2048/768/128/384) are fixed by the module
    feat = jax.random.normal(k_feat, (B, 2048), jnp.float32)   # pooled backbone features
    q_emb = jax.random.normal(k_q, (B, 768), jnp.float32)      # BERT-style question embedding
    a_emb = jax.random.normal(k_a, (B, 768), jnp.float32)      # BERT-style answer embedding

    params = init_params(k_p, num_classes=2)
    pp = preprocess_params(params)

    out = itm_forward(feat, q_emb, a_emb, pp)
    out = jax.block_until_ready(out)
    assert out.shape == (B, 2)

    # Tight check: kernel vs identical bf16/preprocessed math in plain JAX.
    ref_pp = itm_reference_preprocessed(feat, q_emb, a_emb, pp)
    assert jnp.allclose(out, ref_pp, atol=1e-3, rtol=1e-3), "mismatch vs preprocessed reference"

    # Semantic check: kernel vs the original-module f32 forward (attention branch,
    # two-step image linears, concat).  Tolerance covers bf16 weight/activation cast.
    ref_full = itm_reference_full(feat, q_emb, a_emb, params)
    assert jnp.allclose(out, ref_full, atol=2e-2, rtol=2e-2), "mismatch vs full f32 reference"

    print("KERNEL_OK")
</pallas_src>

<mosaic_0001>
module attributes {stable_mosaic.version = 11 : i64} {
  func.func @itm_head_kernel(%arg0: i32, %arg1: memref<8x2048xbf16, #tpu.memory_space<vmem>>, %arg2: memref<8x768xbf16, #tpu.memory_space<vmem>>, %arg3: memref<8x768xbf16, #tpu.memory_space<vmem>>, %arg4: memref<2048x128xbf16, #tpu.memory_space<vmem>>, %arg5: memref<1x128xf32, #tpu.memory_space<vmem>>, %arg6: memref<768x128xbf16, #tpu.memory_space<vmem>>, %arg7: memref<1x128xf32, #tpu.memory_space<vmem>>, %arg8: memref<768x128xbf16, #tpu.memory_space<vmem>>, %arg9: memref<1x128xf32, #tpu.memory_space<vmem>>, %arg10: memref<128x2xbf16, #tpu.memory_space<vmem>>, %arg11: memref<128x2xbf16, #tpu.memory_space<vmem>>, %arg12: memref<128x2xbf16, #tpu.memory_space<vmem>>, %arg13: memref<1x2xf32, #tpu.memory_space<vmem>>, %arg14: memref<8x2xf32, #tpu.memory_space<vmem>>) attributes {dimension_semantics = [#tpu.dimension_semantics<parallel>], iteration_bounds = array<i64: 1>, scalar_prefetch = 0 : i64, scratch_operands = 0 : i64, tpu.core_type = #tpu.core_type<tc>, window_params = [{transform_indices = @transform_0, window_bounds = array<i64: 8, 2048>}, {transform_indices = @transform_1, window_bounds = array<i64: 8, 768>}, {transform_indices = @transform_2, window_bounds = array<i64: 8, 768>}, {pipeline_mode = #tpu.pipeline_mode<synchronous>, transform_indices = @transform_3, window_bounds = array<i64: 2048, 128>}, {pipeline_mode = #tpu.pipeline_mode<synchronous>, transform_indices = @transform_4, window_bounds = array<i64: 1, 128>}, {pipeline_mode = #tpu.pipeline_mode<synchronous>, transform_indices = @transform_5, window_bounds = array<i64: 768, 128>}, {pipeline_mode = #tpu.pipeline_mode<synchronous>, transform_indices = @transform_6, window_bounds = array<i64: 1, 128>}, {pipeline_mode = #tpu.pipeline_mode<synchronous>, transform_indices = @transform_7, window_bounds = array<i64: 768, 128>}, {pipeline_mode = #tpu.pipeline_mode<synchronous>, transform_indices = @transform_8, window_bounds = array<i64: 1, 128>}, {pipeline_mode = #tpu.pipeline_mode<synchronous>, transform_indices = @transform_9, window_bounds = array<i64: 128, 2>}, {pipeline_mode = #tpu.pipeline_mode<synchronous>, transform_indices = @transform_10, window_bounds = array<i64: 128, 2>}, {pipeline_mode = #tpu.pipeline_mode<synchronous>, transform_indices = @transform_11, window_bounds = array<i64: 128, 2>}, {pipeline_mode = #tpu.pipeline_mode<synchronous>, transform_indices = @transform_12, window_bounds = array<i64: 1, 2>}, {transform_indices = @transform_13, window_bounds = array<i64: 8, 2>}]} {
    %c0 = arith.constant 0 : index
    %c0_0 = arith.constant 0 : index
    %0 = vector.load %arg1[%c0, %c0_0] : memref<8x2048xbf16, #tpu.memory_space<vmem>>, vector<8x2048xbf16>
    %c0_1 = arith.constant 0 : index
    %c0_2 = arith.constant 0 : index
    %1 = vector.load %arg4[%c0_1, %c0_2] : memref<2048x128xbf16, #tpu.memory_space<vmem>>, vector<2048x128xbf16>
    %cst = arith.constant dense<0.000000e+00> : vector<8x128xf32>
    %2 = tpu.matmul %0, %1, %cst {dimension_numbers = #tpu.dot_dimension_numbers<[1], [0], [0], [1], [0, 0, 1, 1], [], []>} : vector<8x2048xbf16>, vector<2048x128xbf16>, vector<8x128xf32> -> vector<8x128xf32>
    %c0_3 = arith.constant 0 : index
    %c0_4 = arith.constant 0 : index
    %3 = vector.load %arg5[%c0_3, %c0_4] : memref<1x128xf32, #tpu.memory_space<vmem>>, vector<1x128xf32>
    %4 = vector.broadcast %3 : vector<1x128xf32> to vector<8x128xf32>
    %5 = arith.addf %2, %4 : vector<8x128xf32>
    %c0_5 = arith.constant 0 : index
    %c0_6 = arith.constant 0 : index
    %6 = vector.load %arg2[%c0_5, %c0_6] : memref<8x768xbf16, #tpu.memory_space<vmem>>, vector<8x768xbf16>
    %c0_7 = arith.constant 0 : index
    %c0_8 = arith.constant 0 : index
    %7 = vector.load %arg6[%c0_7, %c0_8] : memref<768x128xbf16, #tpu.memory_space<vmem>>, vector<768x128xbf16>
    %cst_9 = arith.constant dense<0.000000e+00> : vector<8x128xf32>
    %8 = tpu.matmul %6, %7, %cst_9 {dimension_numbers = #tpu.dot_dimension_numbers<[1], [0], [0], [1], [0, 0, 1, 1], [], []>} : vector<8x768xbf16>, vector<768x128xbf16>, vector<8x128xf32> -> vector<8x128xf32>
    %c0_10 = arith.constant 0 : index
    %c0_11 = arith.constant 0 : index
    %9 = vector.load %arg7[%c0_10, %c0_11] : memref<1x128xf32, #tpu.memory_space<vmem>>, vector<1x128xf32>
    %10 = vector.broadcast %9 : vector<1x128xf32> to vector<8x128xf32>
    %11 = arith.addf %8, %10 : vector<8x128xf32>
    %c0_12 = arith.constant 0 : index
    %c0_13 = arith.constant 0 : index
    %12 = vector.load %arg3[%c0_12, %c0_13] : memref<8x768xbf16, #tpu.memory_space<vmem>>, vector<8x768xbf16>
    %c0_14 = arith.constant 0 : index
    %c0_15 = arith.constant 0 : index
    %13 = vector.load %arg8[%c0_14, %c0_15] : memref<768x128xbf16, #tpu.memory_space<vmem>>, vector<768x128xbf16>
    %cst_16 = arith.constant dense<0.000000e+00> : vector<8x128xf32>
    %14 = tpu.matmul %12, %13, %cst_16 {dimension_numbers = #tpu.dot_dimension_numbers<[1], [0], [0], [1], [0, 0, 1, 1], [], []>} : vector<8x768xbf16>, vector<768x128xbf16>, vector<8x128xf32> -> vector<8x128xf32>
    %c0_17 = arith.constant 0 : index
    %c0_18 = arith.constant 0 : index
    %15 = vector.load %arg9[%c0_17, %c0_18] : memref<1x128xf32, #tpu.memory_space<vmem>>, vector<1x128xf32>
    %16 = vector.broadcast %15 : vector<1x128xf32> to vector<8x128xf32>
    %17 = arith.addf %14, %16 : vector<8x128xf32>
    %18 = arith.truncf %5 : vector<8x128xf32> to vector<8x128xbf16>
    %c0_19 = arith.constant 0 : index
    %c0_20 = arith.constant 0 : index
    %19 = vector.load %arg10[%c0_19, %c0_20] : memref<128x2xbf16, #tpu.memory_space<vmem>>, vector<128x2xbf16>
    %cst_21 = arith.constant dense<0.000000e+00> : vector<8x2xf32>
    %20 = tpu.matmul %18, %19, %cst_21 {dimension_numbers = #tpu.dot_dimension_numbers<[1], [0], [0], [1], [0, 0, 1, 1], [], []>} : vector<8x128xbf16>, vector<128x2xbf16>, vector<8x2xf32> -> vector<8x2xf32>
    %21 = arith.truncf %11 : vector<8x128xf32> to vector<8x128xbf16>
    %c0_22 = arith.constant 0 : index
    %c0_23 = arith.constant 0 : index
    %22 = vector.load %arg11[%c0_22, %c0_23] : memref<128x2xbf16, #tpu.memory_space<vmem>>, vector<128x2xbf16>
    %cst_24 = arith.constant dense<0.000000e+00> : vector<8x2xf32>
    %23 = tpu.matmul %21, %22, %cst_24 {dimension_numbers = #tpu.dot_dimension_numbers<[1], [0], [0], [1], [0, 0, 1, 1], [], []>} : vector<8x128xbf16>, vector<128x2xbf16>, vector<8x2xf32> -> vector<8x2xf32>
    %24 = arith.addf %20, %23 : vector<8x2xf32>
    %25 = arith.truncf %17 : vector<8x128xf32> to vector<8x128xbf16>
    %c0_25 = arith.constant 0 : index
    %c0_26 = arith.constant 0 : index
    %26 = vector.load %arg12[%c0_25, %c0_26] : memref<128x2xbf16, #tpu.memory_space<vmem>>, vector<128x2xbf16>
    %cst_27 = arith.constant dense<0.000000e+00> : vector<8x2xf32>
    %27 = tpu.matmul %25, %26, %cst_27 {dimension_numbers = #tpu.dot_dimension_numbers<[1], [0], [0], [1], [0, 0, 1, 1], [], []>} : vector<8x128xbf16>, vector<128x2xbf16>, vector<8x2xf32> -> vector<8x2xf32>
    %28 = arith.addf %24, %27 : vector<8x2xf32>
    %c0_28 = arith.constant 0 : index
    %c0_29 = arith.constant 0 : index
    %29 = vector.load %arg13[%c0_28, %c0_29] : memref<1x2xf32, #tpu.memory_space<vmem>>, vector<1x2xf32>
    %30 = vector.broadcast %29 : vector<1x2xf32> to vector<8x2xf32>
    %31 = arith.addf %28, %30 : vector<8x2xf32>
    %c0_30 = arith.constant 0 : index
    %c0_31 = arith.constant 0 : index
    %32 = vector.load %arg14[%c0_30, %c0_31] : memref<8x2xf32, #tpu.memory_space<vmem>>, vector<8x2xf32>
    tpu.vector_store %arg14[%c0_30, %c0_31], %31 {strides = array<i32>} : memref<8x2xf32, #tpu.memory_space<vmem>>, vector<8x2xf32>,
    return
  }
  func.func @transform_0(%arg0: i32) -> (i32, i32) {
    %c0_i32 = arith.constant 0 : i32
    %c0_i32_0 = arith.constant 0 : i32
    return %arg0, %c0_i32 : i32, i32
  }
  func.func @transform_1(%arg0: i32) -> (i32, i32) {
    %c0_i32 = arith.constant 0 : i32
    %c0_i32_0 = arith.constant 0 : i32
    return %arg0, %c0_i32 : i32, i32
  }
  func.func @transform_2(%arg0: i32) -> (i32, i32) {
    %c0_i32 = arith.constant 0 : i32
    %c0_i32_0 = arith.constant 0 : i32
    return %arg0, %c0_i32 : i32, i32
  }
  func.func @transform_3(%arg0: i32) -> (i32, i32) {
    %c0_i32 = arith.constant 0 : i32
    %c0_i32_0 = arith.constant 0 : i32
    %c0_i32_1 = arith.constant 0 : i32
    return %c0_i32, %c0_i32_0 : i32, i32
  }
  func.func @transform_4(%arg0: i32) -> (i32, i32) {
    %c0_i32 = arith.constant 0 : i32
    %c0_i32_0 = arith.constant 0 : i32
    %c0_i32_1 = arith.constant 0 : i32
    return %c0_i32, %c0_i32_0 : i32, i32
  }
  func.func @transform_5(%arg0: i32) -> (i32, i32) {
    %c0_i32 = arith.constant 0 : i32
    %c0_i32_0 = arith.constant 0 : i32
    %c0_i32_1 = arith.constant 0 : i32
    return %c0_i32, %c0_i32_0 : i32, i32
  }
  func.func @transform_6(%arg0: i32) -> (i32, i32) {
    %c0_i32 = arith.constant 0 : i32
    %c0_i32_0 = arith.constant 0 : i32
    %c0_i32_1 = arith.constant 0 : i32
    return %c0_i32, %c0_i32_0 : i32, i32
  }
  func.func @transform_7(%arg0: i32) -> (i32, i32) {
    %c0_i32 = arith.constant 0 : i32
    %c0_i32_0 = arith.constant 0 : i32
    %c0_i32_1 = arith.constant 0 : i32
    return %c0_i32, %c0_i32_0 : i32, i32
  }
  func.func @transform_8(%arg0: i32) -> (i32, i32) {
    %c0_i32 = arith.constant 0 : i32
    %c0_i32_0 = arith.constant 0 : i32
    %c0_i32_1 = arith.constant 0 : i32
    return %c0_i32, %c0_i32_0 : i32, i32
  }
  func.func @transform_9(%arg0: i32) -> (i32, i32) {
    %c0_i32 = arith.constant 0 : i32
    %c0_i32_0 = arith.constant 0 : i32
    %c0_i32_1 = arith.constant 0 : i32
    return %c0_i32, %c0_i32_0 : i32, i32
  }
  func.func @transform_10(%arg0: i32) -> (i32, i32) {
    %c0_i32 = arith.constant 0 : i32
    %c0_i32_0 = arith.constant 0 : i32
    %c0_i32_1 = arith.constant 0 : i32
    return %c0_i32, %c0_i32_0 : i32, i32
  }
  func.func @transform_11(%arg0: i32) -> (i32, i32) {
    %c0_i32 = arith.constant 0 : i32
    %c0_i32_0 = arith.constant 0 : i32
    %c0_i32_1 = arith.constant 0 : i32
    return %c0_i32, %c0_i32_0 : i32, i32
  }
  func.func @transform_12(%arg0: i32) -> (i32, i32) {
    %c0_i32 = arith.constant 0 : i32
    %c0_i32_0 = arith.constant 0 : i32
    %c0_i32_1 = arith.constant 0 : i32
    return %c0_i32, %c0_i32_0 : i32, i32
  }
  func.func @transform_13(%arg0: i32) -> (i32, i32) {
    %c0_i32 = arith.constant 0 : i32
    %c0_i32_0 = arith.constant 0 : i32
    return %arg0, %c0_i32 : i32, i32
  }
}

</mosaic_0001>

<llo_original>
// kernel: tpu_custom_call.1
$region0: #{tpu_custom_call.1}
  #allocation0 [shape = 'u32[]', space=smem, size = 0x4, offset = 0x4, fixed_abs, tag = 'smem constant byte address 0x4 - core index']
  #allocation1 [shape = 'u32[144,128]{1,0:T(1,128)}', space=vmem, size = 0x12000, scoped, tag = 'internal scratch']
  %s0 = inlined_call_operand.vmem [shape: bf16[8,2048], index: 0, kind: input, shape index: {}]
  %s1 = inlined_call_operand.vmem [shape: bf16[8,768], index: 1, kind: input, shape index: {}]
  %s2 = inlined_call_operand.vmem [shape: bf16[8,768], index: 2, kind: input, shape index: {}]
  %s3 = inlined_call_operand.hbm [shape: bf16[2048,128], index: 3, kind: input, shape index: {}]
  %s4 = inlined_call_operand.vmem [shape: f32[1,128], index: 4, kind: input, shape index: {}]
  %s5 = inlined_call_operand.hbm [shape: bf16[768,128], index: 5, kind: input, shape index: {}]
  %s6 = inlined_call_operand.vmem [shape: f32[1,128], index: 6, kind: input, shape index: {}]
  %s7 = inlined_call_operand.hbm [shape: bf16[768,128], index: 7, kind: input, shape index: {}]
  %s8 = inlined_call_operand.vmem [shape: f32[1,128], index: 8, kind: input, shape index: {}]
  %s9 = inlined_call_operand.vmem [shape: bf16[128,2], index: 9, kind: input, shape index: {}]
  %s10 = inlined_call_operand.vmem [shape: bf16[128,2], index: 10, kind: input, shape index: {}]
  %s11 = inlined_call_operand.vmem [shape: bf16[128,2], index: 11, kind: input, shape index: {}]
  %s12 = inlined_call_operand.vmem [shape: f32[1,2], index: 12, kind: input, shape index: {}]
  %s13 = inlined_call_operand.vmem [shape: f32[8,2], index: 13, kind: output, shape index: {}]
  %s14 = sld [smem:[#allocation0]]
  $region74: #{tpu_custom_call.1} parent=0
    _
  %s16 = ssub.s32 1, %s14
  %s17 = scalar_select 0, %s16, %s14
  $region1: #{tpu_custom_call.1} parent=0
    #allocation2 [shape = 'u8[524288]{0}', space=vmem, size = 0x80000, scoped, tag = 'input window, operand 3, single buffered']
    #allocation3 [shape = 's32[1]{0}', space=sflag, size = 0x4, scoped, tag = 'scoped memory for tpu_custom_call.1']
    #allocation4 [shape = 'u8[196608]{0}', space=vmem, size = 0x30000, scoped, tag = 'input window, operand 5, single buffered']
    #allocation5 [shape = 's32[1]{0}', space=sflag, size = 0x4, scoped, tag = 'scoped memory for tpu_custom_call.1']
    #allocation6 [shape = 'u8[196608]{0}', space=vmem, size = 0x30000, scoped, tag = 'input window, operand 7, single buffered']
    %18 = vsyncpa [#allocation3], 0
    %19 = vsyncpa [#allocation5], 0
    // Predicated region
    $region2: #{tpu_custom_call.1} parent=1 // pred_check
      _
    $region3: #{tpu_custom_call.1} parent=1 // pred_check_branch
      %21 = sbr.rel (0) target = $region5
    $region4: #{tpu_custom_call.1} parent=1 // pred_region
      _
    $region5: #{tpu_custom_call.1} parent=1 // pred_fallthru
      _
    // Predicated region
    $region6: #{tpu_custom_call.1} parent=1 // pred_check
      _
    $region7: #{tpu_custom_call.1} parent=1 // pred_check_branch
      %23 = sbr.rel (0) target = $region9
    $region8: #{tpu_custom_call.1} parent=1 // pred_region
      _
    $region9: #{tpu_custom_call.1} parent=1 // pred_fallthru
      _
    // Predicated region
    $region10: #{tpu_custom_call.1} parent=1 // pred_check
      _
    $region11: #{tpu_custom_call.1} parent=1 // pred_check_branch
      %25 = sbr.rel (0) target = $region13
    $region12: #{tpu_custom_call.1} parent=1 // pred_region
      _
    $region13: #{tpu_custom_call.1} parent=1 // pred_fallthru
      _
    // Predicated region
    $region14: #{tpu_custom_call.1} parent=1 // pred_check
      _
    $region15: #{tpu_custom_call.1} parent=1 // pred_check_branch
      %27 = sbr.rel (0) target = $region17
    $region16: #{tpu_custom_call.1} parent=1 // pred_region
      %s29 = ssub.s32 16384, 16384
      %30 = vsyncadd [#allocation3], %s29
      %s31 = sshll.u32 [#allocation2], 4
      %s32 = int_to_ptr.vmem [resolvable:$true] %s31
      %37 = dma.hbm_to_vmem [thread:$0]  %s3, 16384, %s32, [#allocation3], 64, 64, 4
    $region17: #{tpu_custom_call.1} parent=1 // pred_fallthru
      _
    // Predicated region
    $region18: #{tpu_custom_call.1} parent=1 // pred_check
      _
    $region19: #{tpu_custom_call.1} parent=1 // pred_check_branch
      %39 = sbr.rel (0) target = $region21
    $region20: #{tpu_custom_call.1} parent=1 // pred_region
      _
    $region21: #{tpu_custom_call.1} parent=1 // pred_fallthru
      _
    // Predicated region
    $region22: #{tpu_custom_call.1} parent=1 // pred_check
      _
    $region23: #{tpu_custom_call.1} parent=1 // pred_check_branch
      %41 = sbr.rel (0) target = $region25
    $region24: #{tpu_custom_call.1} parent=1 // pred_region
      %s43 = ssub.s32 6144, 6144
      %44 = vsyncadd [#allocation5], %s43
      %s45 = sshll.u32 [#allocation4], 4
      %s46 = int_to_ptr.vmem [resolvable:$true] %s45
      %51 = dma.hbm_to_vmem [thread:$0]  %s5, 6144, %s46, [#allocation5], 64, 64, 4
    $region25: #{tpu_custom_call.1} parent=1 // pred_fallthru
      _
    // Predicated region
    $region26: #{tpu_custom_call.1} parent=1 // pred_check
      _
    $region27: #{tpu_custom_call.1} parent=1 // pred_check_branch
      %53 = sbr.rel (0) target = $region29
    $region28: #{tpu_custom_call.1} parent=1 // pred_region
      _
    $region29: #{tpu_custom_call.1} parent=1 // pred_fallthru
      _
    // Predicated region
    $region30: #{tpu_custom_call.1} parent=1 // pred_check
      _
    $region31: #{tpu_custom_call.1} parent=1 // pred_check_branch
      %55 = sbr.rel (0) target = $region33
    $region32: #{tpu_custom_call.1} parent=1 // pred_region
      %s57 = ssub.s32 6144, 6144
      %58 = vsyncadd [#allocation5], %s57
      %s59 = sshll.u32 [#allocation6], 4
      %s60 = int_to_ptr.vmem [resolvable:$true] %s59
      %65 = dma.hbm_to_vmem [thread:$0]  %s7, 6144, %s60, [#allocation5], 64, 64, 4
    $region33: #{tpu_custom_call.1} parent=1 // pred_fallthru
      _
    // Predicated region
    $region34: #{tpu_custom_call.1} parent=1 // pred_check
      _
    $region35: #{tpu_custom_call.1} parent=1 // pred_check_branch
      %67 = sbr.rel (0) target = $region37
    $region36: #{tpu_custom_call.1} parent=1 // pred_region
      _
    $region37: #{tpu_custom_call.1} parent=1 // pred_fallthru
      _
    // Predicated region
    $region38: #{tpu_custom_call.1} parent=1 // pred_check
      _
    $region39: #{tpu_custom_call.1} parent=1 // pred_check_branch
      %69 = sbr.rel (0) target = $region41
    $region40: #{tpu_custom_call.1} parent=1 // pred_region
      _
    $region41: #{tpu_custom_call.1} parent=1 // pred_fallthru
      _
    // Predicated region
    $region42: #{tpu_custom_call.1} parent=1 // pred_check
      _
    $region43: #{tpu_custom_call.1} parent=1 // pred_check_branch
      %71 = sbr.rel (0) target = $region45
    $region44: #{tpu_custom_call.1} parent=1 // pred_region
      _
    $region45: #{tpu_custom_call.1} parent=1 // pred_fallthru
      _
    // Predicated region
    $region46: #{tpu_custom_call.1} parent=1 // pred_check
      _
    $region47: #{tpu_custom_call.1} parent=1 // pred_check_branch
      %73 = sbr.rel (0) target = $region49
    $region48: #{tpu_custom_call.1} parent=1 // pred_region
      _
    $region49: #{tpu_custom_call.1} parent=1 // pred_fallthru
      _
    // Predicated region
    $region50: #{tpu_custom_call.1} parent=1 // pred_check
      _
    $region51: #{tpu_custom_call.1} parent=1 // pred_check_branch
      %75 = sbr.rel (0) target = $region53
    $region52: #{tpu_custom_call.1} parent=1 // pred_region
      _
    $region53: #{tpu_custom_call.1} parent=1 // pred_fallthru
      _
    // Predicated region
    $region54: #{tpu_custom_call.1} parent=1 // pred_check
      _
    $region55: #{tpu_custom_call.1} parent=1 // pred_check_branch
      %77 = sbr.rel (0) target = $region57
    $region56: #{tpu_custom_call.1} parent=1 // pred_region
      %78 = dma.done [#allocation3], 16384
    $region57: #{tpu_custom_call.1} parent=1 // pred_fallthru
      _
    // Predicated region
    $region58: #{tpu_custom_call.1} parent=1 // pred_check
      _
    $region59: #{tpu_custom_call.1} parent=1 // pred_check_branch
      %80 = sbr.rel (0) target = $region61
    $region60: #{tpu_custom_call.1} parent=1 // pred_region
      %81 = dma.done [#allocation5], 6144
    $region61: #{tpu_custom_call.1} parent=1 // pred_fallthru
      _
    // Predicated region
    $region62: #{tpu_custom_call.1} parent=1 // pred_check
      _
    $region63: #{tpu_custom_call.1} parent=1 // pred_check_branch
      %83 = sbr.rel (0) target = $region65
    $region64: #{tpu_custom_call.1} parent=1 // pred_region
      %84 = dma.done [#allocation5], 6144
    $region65: #{tpu_custom_call.1} parent=1 // pred_fallthru
      _
    %v86 = vld [vmem:[%s0] sm:$0xff]
    %v87 = vld [vmem:[%s0 + $0x8] sm:$0xff]
    %v88 = vld [vmem:[%s0 + $0x10] sm:$0xff]
    %v89 = vld [vmem:[%s0 + $0x18] sm:$0xff]
    %v90 = vld [vmem:[%s0 + $0x20] sm:$0xff]
    %v91 = vld [vmem:[%s0 + $0x28] sm:$0xff]
    %v92 = vld [vmem:[%s0 + $0x30] sm:$0xff]
    %v93 = vld [vmem:[%s0 + $0x38] sm:$0xff]
    %v94 = vld [vmem:[#allocation2] sm:$0xf]
    %v95 = vld [vmem:[#allocation2 + $0x4] sm:$0xf]
    %v96 = vld [vmem:[#allocation2 + $0x8] sm:$0xf]
    %v97 = vld [vmem:[#allocation2 + $0xc] sm:$0xf]
    %v98 = vld [vmem:[#allocation2 + $0x10] sm:$0xf]
    %v99 = vld [vmem:[#allocation2 + $0x14] sm:$0xf]
    %v100 = vld [vmem:[#allocation2 + $0x18] sm:$0xf]
    %v101 = vld [vmem:[#allocation2 + $0x1c] sm:$0xf]
    %v102 = vld [vmem:[#allocation2 + $0x20] sm:$0xf]
    %v103 = vld [vmem:[#allocation2 + $0x24] sm:$0xf]
    %v104 = vld [vmem:[#allocation2 + $0x28] sm:$0xf]
    %v105 = vld [vmem:[#allocation2 + $0x2c] sm:$0xf]
    %v106 = vld [vmem:[#allocation2 + $0x30] sm:$0xf]
    %v107 = vld [vmem:[#allocation2 + $0x34] sm:$0xf]
    %v108 = vld [vmem:[#allocation2 + $0x38] sm:$0xf]
    %v109 = vld [vmem:[#allocation2 + $0x3c] sm:$0xf]
    %v110 = vld [vmem:[#allocation2 + $0x40] sm:$0xf]
    %v111 = vld [vmem:[#allocation2 + $0x44] sm:$0xf]
    %v112 = vld [vmem:[#allocation2 + $0x48] sm:$0xf]
    %v113 = vld [vmem:[#allocation2 + $0x4c] sm:$0xf]
    %v114 = vld [vmem:[#allocation2 + $0x50] sm:$0xf]
    %v115 = vld [vmem:[#allocation2 + $0x54] sm:$0xf]
    %v116 = vld [vmem:[#allocation2 + $0x58] sm:$0xf]
    %v117 = vld [vmem:[#allocation2 + $0x5c] sm:$0xf]
    %v118 = vld [vmem:[#allocation2 + $0x60] sm:$0xf]
    %v119 = vld [vmem:[#allocation2 + $0x64] sm:$0xf]
    %v120 = vld [vmem:[#allocation2 + $0x68] sm:$0xf]
    %v121 = vld [vmem:[#allocation2 + $0x6c] sm:$0xf]
    %v122 = vld [vmem:[#allocation2 + $0x70] sm:$0xf]
    %v123 = vld [vmem:[#allocation2 + $0x74] sm:$0xf]
    %v124 = vld [vmem:[#allocation2 + $0x78] sm:$0xf]
    %v125 = vld [vmem:[#allocation2 + $0x7c] sm:$0xf]
    %v126 = vld [vmem:[#allocation2 + $0x80] sm:$0xf]
    %v127 = vld [vmem:[#allocation2 + $0x84] sm:$0xf]
    %v128 = vld [vmem:[#allocation2 + $0x88] sm:$0xf]
    %v129 = vld [vmem:[#allocation2 + $0x8c] sm:$0xf]
    %v130 = vld [vmem:[#allocation2 + $0x90] sm:$0xf]
    %v131 = vld [vmem:[#allocation2 + $0x94] sm:$0xf]
    %v132 = vld [vmem:[#allocation2 + $0x98] sm:$0xf]
    %v133 = vld [vmem:[#allocation2 + $0x9c] sm:$0xf]
    %v134 = vld [vmem:[#allocation2 + $0xa0] sm:$0xf]
    %v135 = vld [vmem:[#allocation2 + $0xa4] sm:$0xf]
    %v136 = vld [vmem:[#allocation2 + $0xa8] sm:$0xf]
    %v137 = vld [vmem:[#allocation2 + $0xac] sm:$0xf]
    %v138 = vld [vmem:[#allocation2 + $0xb0] sm:$0xf]
    %v139 = vld [vmem:[#allocation2 + $0xb4] sm:$0xf]
    %v140 = vld [vmem:[#allocation2 + $0xb8] sm:$0xf]
    %v141 = vld [vmem:[#allocation2 + $0xbc] sm:$0xf]
    %v142 = vld [vmem:[#allocation2 + $0xc0] sm:$0xf]
    %v143 = vld [vmem:[#allocation2 + $0xc4] sm:$0xf]
    %v144 = vld [vmem:[#allocation2 + $0xc8] sm:$0xf]
    %v145 = vld [vmem:[#allocation2 + $0xcc] sm:$0xf]
    %v146 = vld [vmem:[#allocation2 + $0xd0] sm:$0xf]
    %v147 = vld [vmem:[#allocation2 + $0xd4] sm:$0xf]
    %v148 = vld [vmem:[#allocation2 + $0xd8] sm:$0xf]
    %v149 = vld [vmem:[#allocation2 + $0xdc] sm:$0xf]
    %v150 = vld [vmem:[#allocation2 + $0xe0] sm:$0xf]
    %v151 = vld [vmem:[#allocation2 + $0xe4] sm:$0xf]
    %v152 = vld [vmem:[#allocation2 + $0xe8] sm:$0xf]
    %v153 = vld [vmem:[#allocation2 + $0xec] sm:$0xf]
    %v154 = vld [vmem:[#allocation2 + $0xf0] sm:$0xf]
    %v155 = vld [vmem:[#allocation2 + $0xf4] sm:$0xf]
    %v156 = vld [vmem:[#allocation2 + $0xf8] sm:$0xf]
    %v157 = vld [vmem:[#allocation2 + $0xfc] sm:$0xf]
    %v158 = vld [vmem:[#allocation2 + $0x100] sm:$0xf]
    %v159 = vld [vmem:[#allocation2 + $0x104] sm:$0xf]
    %v160 = vld [vmem:[#allocation2 + $0x108] sm:$0xf]
    %v161 = vld [vmem:[#allocation2 + $0x10c] sm:$0xf]
    %v162 = vld [vmem:[#allocation2 + $0x110] sm:$0xf]
    %v163 = vld [vmem:[#allocation2 + $0x114] sm:$0xf]
    %v164 = vld [vmem:[#allocation2 + $0x118] sm:$0xf]
    %v165 = vld [vmem:[#allocation2 + $0x11c] sm:$0xf]
    %v166 = vld [vmem:[#allocation2 + $0x120] sm:$0xf]
    %v167 = vld [vmem:[#allocation2 + $0x124] sm:$0xf]
    %v168 = vld [vmem:[#allocation2 + $0x128] sm:$0xf]
    %v169 = vld [vmem:[#allocation2 + $0x12c] sm:$0xf]
    %v170 = vld [vmem:[#allocation2 + $0x130] sm:$0xf]
    %v171 = vld [vmem:[#allocation2 + $0x134] sm:$0xf]
    %v172 = vld [vmem:[#allocation2 + $0x138] sm:$0xf]
    %v173 = vld [vmem:[#allocation2 + $0x13c] sm:$0xf]
    %v174 = vld [vmem:[#allocation2 + $0x140] sm:$0xf]
    %v175 = vld [vmem:[#allocation2 + $0x144] sm:$0xf]
    %v176 = vld [vmem:[#allocation2 + $0x148] sm:$0xf]
    %v177 = vld [vmem:[#allocation2 + $0x14c] sm:$0xf]
    %v178 = vld [vmem:[#allocation2 + $0x150] sm:$0xf]
    %v179 = vld [vmem:[#allocation2 + $0x154] sm:$0xf]
    %v180 = vld [vmem:[#allocation2 + $0x158] sm:$0xf]
    %v181 = vld [vmem:[#allocation2 + $0x15c] sm:$0xf]
    %v182 = vld [vmem:[#allocation2 + $0x160] sm:$0xf]
    %v183 = vld [vmem:[#allocation2 + $0x164] sm:$0xf]
    %v184 = vld [vmem:[#allocation2 + $0x168] sm:$0xf]
    %v185 = vld [vmem:[#allocation2 + $0x16c] sm:$0xf]
    %v186 = vld [vmem:[#allocation2 + $0x170] sm:$0xf]
    %v187 = vld [vmem:[#allocation2 + $0x174] sm:$0xf]
    %v188 = vld [vmem:[#allocation2 + $0x178] sm:$0xf]
    %v189 = vld [vmem:[#allocation2 + $0x17c] sm:$0xf]
    %v190 = vld [vmem:[#allocation2 + $0x180] sm:$0xf]
    %v191 = vld [vmem:[#allocation2 + $0x184] sm:$0xf]
    %v192 = vld [vmem:[#allocation2 + $0x188] sm:$0xf]
    %v193 = vld [vmem:[#allocation2 + $0x18c] sm:$0xf]
    %v194 = vld [vmem:[#allocation2 + $0x190] sm:$0xf]
    %v195 = vld [vmem:[#allocation2 + $0x194] sm:$0xf]
    %v196 = vld [vmem:[#allocation2 + $0x198] sm:$0xf]
    %v197 = vld [vmem:[#allocation2 + $0x19c] sm:$0xf]
    %v198 = vld [vmem:[#allocation2 + $0x1a0] sm:$0xf]
    %v199 = vld [vmem:[#allocation2 + $0x1a4] sm:$0xf]
    %v200 = vld [vmem:[#allocation2 + $0x1a8] sm:$0xf]
    %v201 = vld [vmem:[#allocation2 + $0x1ac] sm:$0xf]
    %v202 = vld [vmem:[#allocation2 + $0x1b0] sm:$0xf]
    %v203 = vld [vmem:[#allocation2 + $0x1b4] sm:$0xf]
    %v204 = vld [vmem:[#allocation2 + $0x1b8] sm:$0xf]
    %v205 = vld [vmem:[#allocation2 + $0x1bc] sm:$0xf]
    %v206 = vld [vmem:[#allocation2 + $0x1c0] sm:$0xf]
    %v207 = vld [vmem:[#allocation2 + $0x1c4] sm:$0xf]
    %v208 = vld [vmem:[#allocation2 + $0x1c8] sm:$0xf]
    %v209 = vld [vmem:[#allocation2 + $0x1cc] sm:$0xf]
    %v210 = vld [vmem:[#allocation2 + $0x1d0] sm:$0xf]
    %v211 = vld [vmem:[#allocation2 + $0x1d4] sm:$0xf]
    %v212 = vld [vmem:[#allocation2 + $0x1d8] sm:$0xf]
    %v213 = vld [vmem:[#allocation2 + $0x1dc] sm:$0xf]
    %v214 = vld [vmem:[#allocation2 + $0x1e0] sm:$0xf]
    %v215 = vld [vmem:[#allocation2 + $0x1e4] sm:$0xf]
    %v216 = vld [vmem:[#allocation2 + $0x1e8] sm:$0xf]
    %v217 = vld [vmem:[#allocation2 + $0x1ec] sm:$0xf]
    %v218 = vld [vmem:[#allocation2 + $0x1f0] sm:$0xf]
    %v219 = vld [vmem:[#allocation2 + $0x1f4] sm:$0xf]
    %v220 = vld [vmem:[#allocation2 + $0x1f8] sm:$0xf]
    %v221 = vld [vmem:[#allocation2 + $0x1fc] sm:$0xf]
    %v222 = vld [vmem:[#allocation2 + $0x200] sm:$0xf]
    %v223 = vld [vmem:[#allocation2 + $0x204] sm:$0xf]
    %v224 = vld [vmem:[#allocation2 + $0x208] sm:$0xf]
    %v225 = vld [vmem:[#allocation2 + $0x20c] sm:$0xf]
    %v226 = vld [vmem:[#allocation2 + $0x210] sm:$0xf]
    %v227 = vld [vmem:[#allocation2 + $0x214] sm:$0xf]
    %v228 = vld [vmem:[#allocation2 + $0x218] sm:$0xf]
    %v229 = vld [vmem:[#allocation2 + $0x21c] sm:$0xf]
    %v230 = vld [vmem:[#allocation2 + $0x220] sm:$0xf]
    %v231 = vld [vmem:[#allocation2 + $0x224] sm:$0xf]
    %v232 = vld [vmem:[#allocation2 + $0x228] sm:$0xf]
    %v233 = vld [vmem:[#allocation2 + $0x22c] sm:$0xf]
    %v234 = vld [vmem:[#allocation2 + $0x230] sm:$0xf]
    %v235 = vld [vmem:[#allocation2 + $0x234] sm:$0xf]
    %v236 = vld [vmem:[#allocation2 + $0x238] sm:$0xf]
    %v237 = vld [vmem:[#allocation2 + $0x23c] sm:$0xf]
    %v238 = vld [vmem:[#allocation2 + $0x240] sm:$0xf]
    %v239 = vld [vmem:[#allocation2 + $0x244] sm:$0xf]
    %v240 = vld [vmem:[#allocation2 + $0x248] sm:$0xf]
    %v241 = vld [vmem:[#allocation2 + $0x24c] sm:$0xf]
    %v242 = vld [vmem:[#allocation2 + $0x250] sm:$0xf]
    %v243 = vld [vmem:[#allocation2 + $0x254] sm:$0xf]
    %v244 = vld [vmem:[#allocation2 + $0x258] sm:$0xf]
    %v245 = vld [vmem:[#allocation2 + $0x25c] sm:$0xf]
    %v246 = vld [vmem:[#allocation2 + $0x260] sm:$0xf]
    %v247 = vld [vmem:[#allocation2 + $0x264] sm:$0xf]
    %v248 = vld [vmem:[#allocation2 + $0x268] sm:$0xf]
    %v249 = vld [vmem:[#allocation2 + $0x26c] sm:$0xf]
    %v250 = vld [vmem:[#allocation2 + $0x270] sm:$0xf]
    %v251 = vld [vmem:[#allocation2 + $0x274] sm:$0xf]
    %v252 = vld [vmem:[#allocation2 + $0x278] sm:$0xf]
    %v253 = vld [vmem:[#allocation2 + $0x27c] sm:$0xf]
    %v254 = vld [vmem:[#allocation2 + $0x280] sm:$0xf]
    %v255 = vld [vmem:[#allocation2 + $0x284] sm:$0xf]
    %v256 = vld [vmem:[#allocation2 + $0x288] sm:$0xf]
    %v257 = vld [vmem:[#allocation2 + $0x28c] sm:$0xf]
    %v258 = vld [vmem:[#allocation2 + $0x290] sm:$0xf]
    %v259 = vld [vmem:[#allocation2 + $0x294] sm:$0xf]
    %v260 = vld [vmem:[#allocation2 + $0x298] sm:$0xf]
    %v261 = vld [vmem:[#allocation2 + $0x29c] sm:$0xf]
    %v262 = vld [vmem:[#allocation2 + $0x2a0] sm:$0xf]
    %v263 = vld [vmem:[#allocation2 + $0x2a4] sm:$0xf]
    %v264 = vld [vmem:[#allocation2 + $0x2a8] sm:$0xf]
    %v265 = vld [vmem:[#allocation2 + $0x2ac] sm:$0xf]
    %v266 = vld [vmem:[#allocation2 + $0x2b0] sm:$0xf]
    %v267 = vld [vmem:[#allocation2 + $0x2b4] sm:$0xf]
    %v268 = vld [vmem:[#allocation2 + $0x2b8] sm:$0xf]
    %v269 = vld [vmem:[#allocation2 + $0x2bc] sm:$0xf]
    %v270 = vld [vmem:[#allocation2 + $0x2c0] sm:$0xf]
    %v271 = vld [vmem:[#allocation2 + $0x2c4] sm:$0xf]
    %v272 = vld [vmem:[#allocation2 + $0x2c8] sm:$0xf]
    %v273 = vld [vmem:[#allocation2 + $0x2cc] sm:$0xf]
    %v274 = vld [vmem:[#allocation2 + $0x2d0] sm:$0xf]
    %v275 = vld [vmem:[#allocation2 + $0x2d4] sm:$0xf]
    %v276 = vld [vmem:[#allocation2 + $0x2d8] sm:$0xf]
    %v277 = vld [vmem:[#allocation2 + $0x2dc] sm:$0xf]
    %v278 = vld [vmem:[#allocation2 + $0x2e0] sm:$0xf]
    %v279 = vld [vmem:[#allocation2 + $0x2e4] sm:$0xf]
    %v280 = vld [vmem:[#allocation2 + $0x2e8] sm:$0xf]
    %v281 = vld [vmem:[#allocation2 + $0x2ec] sm:$0xf]
    %v282 = vld [vmem:[#allocation2 + $0x2f0] sm:$0xf]
    %v283 = vld [vmem:[#allocation2 + $0x2f4] sm:$0xf]
    %v284 = vld [vmem:[#allocation2 + $0x2f8] sm:$0xf]
    %v285 = vld [vmem:[#allocation2 + $0x2fc] sm:$0xf]
    %v286 = vld [vmem:[#allocation2 + $0x300] sm:$0xf]
    %v287 = vld [vmem:[#allocation2 + $0x304] sm:$0xf]
    %v288 = vld [vmem:[#allocation2 + $0x308] sm:$0xf]
    %v289 = vld [vmem:[#allocation2 + $0x30c] sm:$0xf]
    %v290 = vld [vmem:[#allocation2 + $0x310] sm:$0xf]
    %v291 = vld [vmem:[#allocation2 + $0x314] sm:$0xf]
    %v292 = vld [vmem:[#allocation2 + $0x318] sm:$0xf]
    %v293 = vld [vmem:[#allocation2 + $0x31c] sm:$0xf]
    %v294 = vld [vmem:[#allocation2 + $0x320] sm:$0xf]
    %v295 = vld [vmem:[#allocation2 + $0x324] sm:$0xf]
    %v296 = vld [vmem:[#allocation2 + $0x328] sm:$0xf]
    %v297 = vld [vmem:[#allocation2 + $0x32c] sm:$0xf]
    %v298 = vld [vmem:[#allocation2 + $0x330] sm:$0xf]
    %v299 = vld [vmem:[#allocation2 + $0x334] sm:$0xf]
    %v300 = vld [vmem:[#allocation2 + $0x338] sm:$0xf]
    %v301 = vld [vmem:[#allocation2 + $0x33c] sm:$0xf]
    %v302 = vld [vmem:[#allocation2 + $0x340] sm:$0xf]
    %v303 = vld [vmem:[#allocation2 + $0x344] sm:$0xf]
    %v304 = vld [vmem:[#allocation2 + $0x348] sm:$0xf]
    %v305 = vld [vmem:[#allocation2 + $0x34c] sm:$0xf]
    %v306 = vld [vmem:[#allocation2 + $0x350] sm:$0xf]
    %v307 = vld [vmem:[#allocation2 + $0x354] sm:$0xf]
    %v308 = vld [vmem:[#allocation2 + $0x358] sm:$0xf]
    %v309 = vld [vmem:[#allocation2 + $0x35c] sm:$0xf]
    %v310 = vld [vmem:[#allocation2 + $0x360] sm:$0xf]
    %v311 = vld [vmem:[#allocation2 + $0x364] sm:$0xf]
    %v312 = vld [vmem:[#allocation2 + $0x368] sm:$0xf]
    %v313 = vld [vmem:[#allocation2 + $0x36c] sm:$0xf]
    %v314 = vld [vmem:[#allocation2 + $0x370] sm:$0xf]
    %v315 = vld [vmem:[#allocation2 + $0x374] sm:$0xf]
    %v316 = vld [vmem:[#allocation2 + $0x378] sm:$0xf]
    %v317 = vld [vmem:[#allocation2 + $0x37c] sm:$0xf]
    %v318 = vld [vmem:[#allocation2 + $0x380] sm:$0xf]
    %v319 = vld [vmem:[#allocation2 + $0x384] sm:$0xf]
    %v320 = vld [vmem:[#allocation2 + $0x388] sm:$0xf]
    %v321 = vld [vmem:[#allocation2 + $0x38c] sm:$0xf]
    %v322 = vld [vmem:[#allocation2 + $0x390] sm:$0xf]
    %v323 = vld [vmem:[#allocation2 + $0x394] sm:$0xf]
    %v324 = vld [vmem:[#allocation2 + $0x398] sm:$0xf]
    %v325 = vld [vmem:[#allocation2 + $0x39c] sm:$0xf]
    %v326 = vld [vmem:[#allocation2 + $0x3a0] sm:$0xf]
    %v327 = vld [vmem:[#allocation2 + $0x3a4] sm:$0xf]
    %v328 = vld [vmem:[#allocation2 + $0x3a8] sm:$0xf]
    %v329 = vld [vmem:[#allocation2 + $0x3ac] sm:$0xf]
    %v330 = vld [vmem:[#allocation2 + $0x3b0] sm:$0xf]
    %v331 = vld [vmem:[#allocation2 + $0x3b4] sm:$0xf]
    %v332 = vld [vmem:[#allocation2 + $0x3b8] sm:$0xf]
    %v333 = vld [vmem:[#allocation2 + $0x3bc] sm:$0xf]
    %v334 = vld [vmem:[#allocation2 + $0x3c0] sm:$0xf]
    %v335 = vld [vmem:[#allocation2 + $0x3c4] sm:$0xf]
    %v336 = vld [vmem:[#allocation2 + $0x3c8] sm:$0xf]
    %v337 = vld [vmem:[#allocation2 + $0x3cc] sm:$0xf]
    %v338 = vld [vmem:[#allocation2 + $0x3d0] sm:$0xf]
    %v339 = vld [vmem:[#allocation2 + $0x3d4] sm:$0xf]
    %v340 = vld [vmem:[#allocation2 + $0x3d8] sm:$0xf]
    %v341 = vld [vmem:[#allocation2 + $0x3dc] sm:$0xf]
    %v342 = vld [vmem:[#allocation2 + $0x3e0] sm:$0xf]
    %v343 = vld [vmem:[#allocation2 + $0x3e4] sm:$0xf]
    %v344 = vld [vmem:[#allocation2 + $0x3e8] sm:$0xf]
    %v345 = vld [vmem:[#allocation2 + $0x3ec] sm:$0xf]
    %v346 = vld [vmem:[#allocation2 + $0x3f0] sm:$0xf]
    %v347 = vld [vmem:[#allocation2 + $0x3f4] sm:$0xf]
    %v348 = vld [vmem:[#allocation2 + $0x3f8] sm:$0xf]
    %v349 = vld [vmem:[#allocation2 + $0x3fc] sm:$0xf]
    %v350 = vld [vmem:[%s4] sm:$0x1]
    %v352 = vlaneseq
    %v353 = vshrl.u32 %v352, 7
    %v354 = vsub.s32 0, %v353
    %v355 = vrot.slane %v350, %v354
    %v365 = vunpack.c.l.b16 %v86
    %v366 = vunpack.c.h.b16 %v86
    %v367 = vunpack.c.l.b16 %v87
    %v368 = vunpack.c.h.b16 %v87
    %v369 = vunpack.c.l.b16 %v88
    %v370 = vunpack.c.h.b16 %v88
    %v371 = vunpack.c.l.b16 %v89
    %v372 = vunpack.c.h.b16 %v89
    %v373 = vunpack.c.l.b16 %v90
    %v374 = vunpack.c.h.b16 %v90
    %v375 = vunpack.c.l.b16 %v91
    %v376 = vunpack.c.h.b16 %v91
    %v377 = vunpack.c.l.b16 %v92
    %v378 = vunpack.c.h.b16 %v92
    %v379 = vunpack.c.l.b16 %v93
    %v380 = vunpack.c.h.b16 %v93
    %v381 = vpack.c.b16 %v365, %v365
    %v382 = vpack.c.b16 %v366, %v366
    %v383 = vpack.c.b16 %v367, %v367
    %v384 = vpack.c.b16 %v368, %v368
    %v385 = vpack.c.b16 %v369, %v369
    %v386 = vpack.c.b16 %v370, %v370
    %v387 = vpack.c.b16 %v371, %v371
    %v388 = vpack.c.b16 %v372, %v372
    %v389 = vpack.c.b16 %v373, %v373
    %v390 = vpack.c.b16 %v374, %v374
    %v391 = vpack.c.b16 %v375, %v375
    %v392 = vpack.c.b16 %v376, %v376
    %v393 = vpack.c.b16 %v377, %v377
    %v394 = vpack.c.b16 %v378, %v378
    %v395 = vpack.c.b16 %v379, %v379
    %v396 = vpack.c.b16 %v380, %v380
    %v669 = vunpack.c.l.b16 %v94
    %v670 = vunpack.c.l.b16 %v95
    %v671 = vunpack.c.l.b16 %v96
    %v672 = vunpack.c.l.b16 %v97
    %v673 = vunpack.c.l.b16 %v98
    %v674 = vunpack.c.l.b16 %v99
    %v675 = vunpack.c.l.b16 %v100
    %v676 = vunpack.c.l.b16 %v101
    %v677 = vunpack.c.l.b16 %v102
    %v678 = vunpack.c.l.b16 %v103
    %v679 = vunpack.c.l.b16 %v104
    %v680 = vunpack.c.l.b16 %v105
    %v681 = vunpack.c.l.b16 %v106
    %v682 = vunpack.c.l.b16 %v107
    %v683 = vunpack.c.l.b16 %v108
    %v684 = vunpack.c.l.b16 %v109
    %v685 = vunpack.c.l.b16 %v110
    %v686 = vunpack.c.l.b16 %v111
    %v687 = vunpack.c.l.b16 %v112
    %v688 = vunpack.c.l.b16 %v113
    %v689 = vunpack.c.l.b16 %v114
    %v690 = vunpack.c.l.b16 %v115
    %v691 = vunpack.c.l.b16 %v116
    %v692 = vunpack.c.l.b16 %v117
    %v693 = vunpack.c.l.b16 %v118
    %v694 = vunpack.c.l.b16 %v119
    %v695 = vunpack.c.l.b16 %v120
    %v696 = vunpack.c.l.b16 %v121
    %v697 = vunpack.c.l.b16 %v122
    %v698 = vunpack.c.l.b16 %v123
    %v699 = vunpack.c.l.b16 %v124
    %v700 = vunpack.c.l.b16 %v125
    %v701 = vunpack.c.l.b16 %v126
    %v702 = vunpack.c.l.b16 %v127
    %v703 = vunpack.c.l.b16 %v128
    %v704 = vunpack.c.l.b16 %v129
    %v705 = vunpack.c.l.b16 %v130
    %v706 = vunpack.c.l.b16 %v131
    %v707 = vunpack.c.l.b16 %v132
    %v708 = vunpack.c.l.b16 %v133
    %v709 = vunpack.c.l.b16 %v134
    %v710 = vunpack.c.l.b16 %v135
    %v711 = vunpack.c.l.b16 %v136
    %v712 = vunpack.c.l.b16 %v137
    %v713 = vunpack.c.l.b16 %v138
    %v714 = vunpack.c.l.b16 %v139
    %v715 = vunpack.c.l.b16 %v140
    %v716 = vunpack.c.l.b16 %v141
    %v717 = vunpack.c.l.b16 %v142
    %v718 = vunpack.c.l.b16 %v143
    %v719 = vunpack.c.l.b16 %v144
    %v720 = vunpack.c.l.b16 %v145
    %v721 = vunpack.c.l.b16 %v146
    %v722 = vunpack.c.l.b16 %v147
    %v723 = vunpack.c.l.b16 %v148
    %v724 = vunpack.c.l.b16 %v149
    %v725 = vunpack.c.l.b16 %v150
    %v726 = vunpack.c.l.b16 %v151
    %v727 = vunpack.c.l.b16 %v152
    %v728 = vunpack.c.l.b16 %v153
    %v729 = vunpack.c.l.b16 %v154
    %v730 = vunpack.c.l.b16 %v155
    %v731 = vunpack.c.l.b16 %v156
    %v732 = vunpack.c.l.b16 %v157
    %v733 = vunpack.c.l.b16 %v158
    %v734 = vunpack.c.l.b16 %v159
    %v735 = vunpack.c.l.b16 %v160
    %v736 = vunpack.c.l.b16 %v161
    %v737 = vunpack.c.l.b16 %v162
    %v738 = vunpack.c.l.b16 %v163
    %v739 = vunpack.c.l.b16 %v164
    %v740 = vunpack.c.l.b16 %v165
    %v741 = vunpack.c.l.b16 %v166
    %v742 = vunpack.c.l.b16 %v167
    %v743 = vunpack.c.l.b16 %v168
    %v744 = vunpack.c.l.b16 %v169
    %v745 = vunpack.c.l.b16 %v170
    %v746 = vunpack.c.l.b16 %v171
    %v747 = vunpack.c.l.b16 %v172
    %v748 = vunpack.c.l.b16 %v173
    %v749 = vunpack.c.l.b16 %v174
    %v750 = vunpack.c.l.b16 %v175
    %v751 = vunpack.c.l.b16 %v176
    %v752 = vunpack.c.l.b16 %v177
    %v753 = vunpack.c.l.b16 %v178
    %v754 = vunpack.c.l.b16 %v179
    %v755 = vunpack.c.l.b16 %v180
    %v756 = vunpack.c.l.b16 %v181
    %v757 = vunpack.c.l.b16 %v182
    %v758 = vunpack.c.l.b16 %v183
    %v759 = vunpack.c.l.b16 %v184
    %v760 = vunpack.c.l.b16 %v185
    %v761 = vunpack.c.l.b16 %v186
    %v762 = vunpack.c.l.b16 %v187
    %v763 = vunpack.c.l.b16 %v188
    %v764 = vunpack.c.l.b16 %v189
    %v765 = vunpack.c.l.b16 %v190
    %v766 = vunpack.c.l.b16 %v191
    %v767 = vunpack.c.l.b16 %v192
    %v768 = vunpack.c.l.b16 %v193
    %v769 = vunpack.c.l.b16 %v194
    %v770 = vunpack.c.l.b16 %v195
    %v771 = vunpack.c.l.b16 %v196
    %v772 = vunpack.c.l.b16 %v197
    %v773 = vunpack.c.l.b16 %v198
    %v774 = vunpack.c.l.b16 %v199
    %v775 = vunpack.c.l.b16 %v200
    %v776 = vunpack.c.l.b16 %v201
    %v777 = vunpack.c.l.b16 %v202
    %v778 = vunpack.c.l.b16 %v203
    %v779 = vunpack.c.l.b16 %v204
    %v780 = vunpack.c.l.b16 %v205
    %v781 = vunpack.c.l.b16 %v206
    %v782 = vunpack.c.l.b16 %v207
    %v783 = vunpack.c.l.b16 %v208
    %v784 = vunpack.c.l.b16 %v209
    %v785 = vunpack.c.l.b16 %v210
    %v786 = vunpack.c.l.b16 %v211
    %v787 = vunpack.c.l.b16 %v212
    %v788 = vunpack.c.l.b16 %v213
    %v789 = vunpack.c.l.b16 %v214
    %v790 = vunpack.c.l.b16 %v215
    %v791 = vunpack.c.l.b16 %v216
    %v792 = vunpack.c.l.b16 %v217
    %v793 = vunpack.c.l.b16 %v218
    %v794 = vunpack.c.l.b16 %v219
    %v795 = vunpack.c.l.b16 %v220
    %v796 = vunpack.c.l.b16 %v221
    %v797 = vunpack.c.l.b16 %v222
    %v798 = vunpack.c.l.b16 %v223
    %v799 = vunpack.c.l.b16 %v224
    %v800 = vunpack.c.l.b16 %v225
    %v801 = vunpack.c.l.b16 %v226
    %v802 = vunpack.c.l.b16 %v227
    %v803 = vunpack.c.l.b16 %v228
    %v804 = vunpack.c.l.b16 %v229
    %v805 = vunpack.c.l.b16 %v230
    %v806 = vunpack.c.l.b16 %v231
    %v807 = vunpack.c.l.b16 %v232
    %v808 = vunpack.c.l.b16 %v233
    %v809 = vunpack.c.l.b16 %v234
    %v810 = vunpack.c.l.b16 %v235
    %v811 = vunpack.c.l.b16 %v236
    %v812 = vunpack.c.l.b16 %v237
    %v813 = vunpack.c.l.b16 %v238
    %v814 = vunpack.c.l.b16 %v239
    %v815 = vunpack.c.l.b16 %v240
    %v816 = vunpack.c.l.b16 %v241
    %v817 = vunpack.c.l.b16 %v242
    %v818 = vunpack.c.l.b16 %v243
    %v819 = vunpack.c.l.b16 %v244
    %v820 = vunpack.c.l.b16 %v245
    %v821 = vunpack.c.l.b16 %v246
    %v822 = vunpack.c.l.b16 %v247
    %v823 = vunpack.c.l.b16 %v248
    %v824 = vunpack.c.l.b16 %v249
    %v825 = vunpack.c.l.b16 %v250
    %v826 = vunpack.c.l.b16 %v251
    %v827 = vunpack.c.l.b16 %v252
    %v828 = vunpack.c.l.b16 %v253
    %v829 = vunpack.c.l.b16 %v254
    %v830 = vunpack.c.l.b16 %v255
    %v831 = vunpack.c.l.b16 %v256
    %v832 = vunpack.c.l.b16 %v257
    %v833 = vunpack.c.l.b16 %v258
    %v834 = vunpack.c.l.b16 %v259
    %v835 = vunpack.c.l.b16 %v260
    %v836 = vunpack.c.l.b16 %v261
    %v837 = vunpack.c.l.b16 %v262
    %v838 = vunpack.c.l.b16 %v263
    %v839 = vunpack.c.l.b16 %v264
    %v840 = vunpack.c.l.b16 %v265
    %v841 = vunpack.c.l.b16 %v266
    %v842 = vunpack.c.l.b16 %v267
    %v843 = vunpack.c.l.b16 %v268
    %v844 = vunpack.c.l.b16 %v269
    %v845 = vunpack.c.l.b16 %v270
    %v846 = vunpack.c.l.b16 %v271
    %v847 = vunpack.c.l.b16 %v272
    %v848 = vunpack.c.l.b16 %v273
    %v849 = vunpack.c.l.b16 %v274
    %v850 = vunpack.c.l.b16 %v275
    %v851 = vunpack.c.l.b16 %v276
    %v852 = vunpack.c.l.b16 %v277
    %v853 = vunpack.c.l.b16 %v278
    %v854 = vunpack.c.l.b16 %v279
    %v855 = vunpack.c.l.b16 %v280
    %v856 = vunpack.c.l.b16 %v281
    %v857 = vunpack.c.l.b16 %v282
    %v858 = vunpack.c.l.b16 %v283
    %v859 = vunpack.c.l.b16 %v284
    %v860 = vunpack.c.l.b16 %v285
    %v861 = vunpack.c.l.b16 %v286
    %v862 = vunpack.c.l.b16 %v287
    %v863 = vunpack.c.l.b16 %v288
    %v864 = vunpack.c.l.b16 %v289
    %v865 = vunpack.c.l.b16 %v290
    %v866 = vunpack.c.l.b16 %v291
    %v867 = vunpack.c.l.b16 %v292
    %v868 = vunpack.c.l.b16 %v293
    %v869 = vunpack.c.l.b16 %v294
    %v870 = vunpack.c.l.b16 %v295
    %v871 = vunpack.c.l.b16 %v296
    %v872 = vunpack.c.l.b16 %v297
    %v873 = vunpack.c.l.b16 %v298
    %v874 = vunpack.c.l.b16 %v299
    %v875 = vunpack.c.l.b16 %v300
    %v876 = vunpack.c.l.b16 %v301
    %v877 = vunpack.c.l.b16 %v302
    %v878 = vunpack.c.l.b16 %v303
    %v879 = vunpack.c.l.b16 %v304
    %v880 = vunpack.c.l.b16 %v305
    %v881 = vunpack.c.l.b16 %v306
    %v882 = vunpack.c.l.b16 %v307
    %v883 = vunpack.c.l.b16 %v308
    %v884 = vunpack.c.l.b16 %v309
    %v885 = vunpack.c.l.b16 %v310
    %v886 = vunpack.c.l.b16 %v311
    %v887 = vunpack.c.l.b16 %v312
    %v888 = vunpack.c.l.b16 %v313
    %v889 = vunpack.c.l.b16 %v314
    %v890 = vunpack.c.l.b16 %v315
    %v891 = vunpack.c.l.b16 %v316
    %v892 = vunpack.c.l.b16 %v317
    %v893 = vunpack.c.l.b16 %v318
    %v894 = vunpack.c.l.b16 %v319
    %v895 = vunpack.c.l.b16 %v320
    %v896 = vunpack.c.l.b16 %v321
    %v897 = vunpack.c.l.b16 %v322
    %v898 = vunpack.c.l.b16 %v323
    %v899 = vunpack.c.l.b16 %v324
    %v900 = vunpack.c.l.b16 %v325
    %v901 = vunpack.c.l.b16 %v326
    %v902 = vunpack.c.l.b16 %v327
    %v903 = vunpack.c.l.b16 %v328
    %v904 = vunpack.c.l.b16 %v329
    %v905 = vunpack.c.l.b16 %v330
    %v906 = vunpack.c.l.b16 %v331
    %v907 = vunpack.c.l.b16 %v332
    %v908 = vunpack.c.l.b16 %v333
    %v909 = vunpack.c.l.b16 %v334
    %v910 = vunpack.c.l.b16 %v335
    %v911 = vunpack.c.l.b16 %v336
    %v912 = vunpack.c.l.b16 %v337
    %v913 = vunpack.c.l.b16 %v338
    %v914 = vunpack.c.l.b16 %v339
    %v915 = vunpack.c.l.b16 %v340
    %v916 = vunpack.c.l.b16 %v341
    %v917 = vunpack.c.l.b16 %v342
    %v918 = vunpack.c.l.b16 %v343
    %v919 = vunpack.c.l.b16 %v344
    %v920 = vunpack.c.l.b16 %v345
    %v921 = vunpack.c.l.b16 %v346
    %v922 = vunpack.c.l.b16 %v347
    %v923 = vunpack.c.l.b16 %v348
    %v924 = vunpack.c.l.b16 %v349
    %v925 = vpack.c.b16 %v670, %v669
    %v926 = vpack.c.b16 %v672, %v671
    %v927 = vpack.c.b16 %v674, %v673
    %v928 = vpack.c.b16 %v676, %v675
    %v929 = vpack.c.b16 %v678, %v677
    %v930 = vpack.c.b16 %v680, %v679
    %v931 = vpack.c.b16 %v682, %v681
    %v932 = vpack.c.b16 %v684, %v683
    %v933 = vpack.c.b16 %v686, %v685
    %v934 = vpack.c.b16 %v688, %v687
    %v935 = vpack.c.b16 %v690, %v689
    %v936 = vpack.c.b16 %v692, %v691
    %v937 = vpack.c.b16 %v694, %v693
    %v938 = vpack.c.b16 %v696, %v695
    %v939 = vpack.c.b16 %v698, %v697
    %v940 = vpack.c.b16 %v700, %v699
    %v941 = vpack.c.b16 %v702, %v701
    %v942 = vpack.c.b16 %v704, %v703
    %v943 = vpack.c.b16 %v706, %v705
    %v944 = vpack.c.b16 %v708, %v707
    %v945 = vpack.c.b16 %v710, %v709
    %v946 = vpack.c.b16 %v712, %v711
    %v947 = vpack.c.b16 %v714, %v713
    %v948 = vpack.c.b16 %v716, %v715
    %v949 = vpack.c.b16 %v718, %v717
    %v950 = vpack.c.b16 %v720, %v719
    %v951 = vpack.c.b16 %v722, %v721
    %v952 = vpack.c.b16 %v724, %v723
    %v953 = vpack.c.b16 %v726, %v725
    %v954 = vpack.c.b16 %v728, %v727
    %v955 = vpack.c.b16 %v730, %v729
    %v956 = vpack.c.b16 %v732, %v731
    %v957 = vpack.c.b16 %v734, %v733
    %v958 = vpack.c.b16 %v736, %v735
    %v959 = vpack.c.b16 %v738, %v737
    %v960 = vpack.c.b16 %v740, %v739
    %v961 = vpack.c.b16 %v742, %v741
    %v962 = vpack.c.b16 %v744, %v743
    %v963 = vpack.c.b16 %v746, %v745
    %v964 = vpack.c.b16 %v748, %v747
    %v965 = vpack.c.b16 %v750, %v749
    %v966 = vpack.c.b16 %v752, %v751
    %v967 = vpack.c.b16 %v754, %v753
    %v968 = vpack.c.b16 %v756, %v755
    %v969 = vpack.c.b16 %v758, %v757
    %v970 = vpack.c.b16 %v760, %v759
    %v971 = vpack.c.b16 %v762, %v761
    %v972 = vpack.c.b16 %v764, %v763
    %v973 = vpack.c.b16 %v766, %v765
    %v974 = vpack.c.b16 %v768, %v767
    %v975 = vpack.c.b16 %v770, %v769
    %v976 = vpack.c.b16 %v772, %v771
    %v977 = vpack.c.b16 %v774, %v773
    %v978 = vpack.c.b16 %v776, %v775
    %v979 = vpack.c.b16 %v778, %v777
    %v980 = vpack.c.b16 %v780, %v779
    %v981 = vpack.c.b16 %v782, %v781
    %v982 = vpack.c.b16 %v784, %v783
    %v983 = vpack.c.b16 %v786, %v785
    %v984 = vpack.c.b16 %v788, %v787
    %v985 = vpack.c.b16 %v790, %v789
    %v986 = vpack.c.b16 %v792, %v791
    %v987 = vpack.c.b16 %v794, %v793
    %v988 = vpack.c.b16 %v796, %v795
    %v989 = vpack.c.b16 %v798, %v797
    %v990 = vpack.c.b16 %v800, %v799
    %v991 = vpack.c.b16 %v802, %v801
    %v992 = vpack.c.b16 %v804, %v803
    %v993 = vpack.c.b16 %v806, %v805
    %v994 = vpack.c.b16 %v808, %v807
    %v995 = vpack.c.b16 %v810, %v809
    %v996 = vpack.c.b16 %v812, %v811
    %v997 = vpack.c.b16 %v814, %v813
    %v998 = vpack.c.b16 %v816, %v815
    %v999 = vpack.c.b16 %v818, %v817
    %v1000 = vpack.c.b16 %v820, %v819
    %v1001 = vpack.c.b16 %v822, %v821
    %v1002 = vpack.c.b16 %v824, %v823
    %v1003 = vpack.c.b16 %v826, %v825
    %v1004 = vpack.c.b16 %v828, %v827
    %v1005 = vpack.c.b16 %v830, %v829
    %v1006 = vpack.c.b16 %v832, %v831
    %v1007 = vpack.c.b16 %v834, %v833
    %v1008 = vpack.c.b16 %v836, %v835
    %v1009 = vpack.c.b16 %v838, %v837
    %v1010 = vpack.c.b16 %v840, %v839
    %v1011 = vpack.c.b16 %v842, %v841
    %v1012 = vpack.c.b16 %v844, %v843
    %v1013 = vpack.c.b16 %v846, %v845
    %v1014 = vpack.c.b16 %v848, %v847
    %v1015 = vpack.c.b16 %v850, %v849
    %v1016 = vpack.c.b16 %v852, %v851
    %v1017 = vpack.c.b16 %v854, %v853
    %v1018 = vpack.c.b16 %v856, %v855
    %v1019 = vpack.c.b16 %v858, %v857
    %v1020 = vpack.c.b16 %v860, %v859
    %v1021 = vpack.c.b16 %v862, %v861
    %v1022 = vpack.c.b16 %v864, %v863
    %v1023 = vpack.c.b16 %v866, %v865
    %v1024 = vpack.c.b16 %v868, %v867
    %v1025 = vpack.c.b16 %v870, %v869
    %v1026 = vpack.c.b16 %v872, %v871
    %v1027 = vpack.c.b16 %v874, %v873
    %v1028 = vpack.c.b16 %v876, %v875
    %v1029 = vpack.c.b16 %v878, %v877
    %v1030 = vpack.c.b16 %v880, %v879
    %v1031 = vpack.c.b16 %v882, %v881
    %v1032 = vpack.c.b16 %v884, %v883
    %v1033 = vpack.c.b16 %v886, %v885
    %v1034 = vpack.c.b16 %v888, %v887
    %v1035 = vpack.c.b16 %v890, %v889
    %v1036 = vpack.c.b16 %v892, %v891
    %v1037 = vpack.c.b16 %v894, %v893
    %v1038 = vpack.c.b16 %v896, %v895
    %v1039 = vpack.c.b16 %v898, %v897
    %v1040 = vpack.c.b16 %v900, %v899
    %v1041 = vpack.c.b16 %v902, %v901
    %v1042 = vpack.c.b16 %v904, %v903
    %v1043 = vpack.c.b16 %v906, %v905
    %v1044 = vpack.c.b16 %v908, %v907
    %v1045 = vpack.c.b16 %v910, %v909
    %v1046 = vpack.c.b16 %v912, %v911
    %v1047 = vpack.c.b16 %v914, %v913
    %v1048 = vpack.c.b16 %v916, %v915
    %v1049 = vpack.c.b16 %v918, %v917
    %v1050 = vpack.c.b16 %v920, %v919
    %v1051 = vpack.c.b16 %v922, %v921
    %v1052 = vpack.c.b16 %v924, %v923
    %1181 = vmatprep.subr.bf16.mxu0 0
    %1182 = vmatpush1.bf16.msra.mxu0 %v932
    %1183 = vmatprep.subr.bf16.mxu0 0
    %1184 = vmatpush1.bf16.msra.mxu0 %v931
    %1185 = vmatprep.subr.bf16.mxu0 0
    %1186 = vmatpush1.bf16.msra.mxu0 %v930
    %1187 = vmatprep.subr.bf16.mxu0 0
    %1188 = vmatpush1.bf16.msra.mxu0 %v929
    %1189 = vmatprep.subr.bf16.mxu0 0
    %1190 = vmatpush1.bf16.msra.mxu0 %v928
    %1191 = vmatprep.subr.bf16.mxu0 0
    %1192 = vmatpush1.bf16.msra.mxu0 %v927
    %1193 = vmatprep.subr.bf16.mxu0 0
    %1194 = vmatpush1.bf16.msra.mxu0 %v926
    %1195 = vmatprep.subr.bf16.mxu0 0
    %1196 = vmatpush1.bf16.msra.mxu0 %v925
    %1197 = vmatprep.subr.bf16.mxu0 0
    %1198 = vmatpush2.bf16.msra.mxu0 %v940
    %1199 = vmatprep.subr.bf16.mxu0 0
    %1200 = vmatpush2.bf16.msra.mxu0 %v939
    %1201 = vmatprep.subr.bf16.mxu0 0
    %1202 = vmatpush2.bf16.msra.mxu0 %v938
    %1203 = vmatprep.subr.bf16.mxu0 0
    %1204 = vmatpush2.bf16.msra.mxu0 %v937
    %1205 = vmatprep.subr.bf16.mxu0 0
    %1206 = vmatpush2.bf16.msra.mxu0 %v936
    %1207 = vmatprep.subr.bf16.mxu0 0
    %1208 = vmatpush2.bf16.msra.mxu0 %v935
    %1209 = vmatprep.subr.bf16.mxu0 0
    %1210 = vmatpush2.bf16.msra.mxu0 %v934
    %1211 = vmatprep.subr.bf16.mxu0 0
    %1212 = vmatpush2.bf16.msra.mxu0 %v933
    %1213 = vmatprep.mubr.bf16.mxu0 %v382
    %1214 = vmatmul.mubr.bf16.gmra.mxu0 %v381
    %v1215 = vpop.f32.mrf.mxu0
    %v1216 = vadd.f32 %v355, %v1215
    %v1217 = vpop.f32.mrf.mxu0
    %v1218 = vpop.f32.mrf.mxu0
    %v1219 = vpop.f32.mrf.mxu0
    %1220 = vdwg.mxu0
    %1221 = vmatprep.subr.bf16.mxu0 0
    %1222 = vmatpush1.bf16.msra.mxu0 %v948
    %1223 = vmatprep.subr.bf16.mxu0 0
    %1224 = vmatpush1.bf16.msra.mxu0 %v947
    %1225 = vmatprep.subr.bf16.mxu0 0
    %1226 = vmatpush1.bf16.msra.mxu0 %v946
    %1227 = vmatprep.subr.bf16.mxu0 0
    %1228 = vmatpush1.bf16.msra.mxu0 %v945
    %1229 = vmatprep.subr.bf16.mxu0 0
    %1230 = vmatpush1.bf16.msra.mxu0 %v944
    %1231 = vmatprep.subr.bf16.mxu0 0
    %1232 = vmatpush1.bf16.msra.mxu0 %v943
    %1233 = vmatprep.subr.bf16.mxu0 0
    %1234 = vmatpush1.bf16.msra.mxu0 %v942
    %1235 = vmatprep.subr.bf16.mxu0 0
    %1236 = vmatpush1.bf16.msra.mxu0 %v941
    %1237 = vmatprep.subr.bf16.mxu0 0
    %1238 = vmatpush2.bf16.msra.mxu0 %v956
    %1239 = vmatprep.subr.bf16.mxu0 0
    %1240 = vmatpush2.bf16.msra.mxu0 %v955
    %1241 = vmatprep.subr.bf16.mxu0 0
    %1242 = vmatpush2.bf16.msra.mxu0 %v954
    %1243 = vmatprep.subr.bf16.mxu0 0
    %1244 = vmatpush2.bf16.msra.mxu0 %v953
    %1245 = vmatprep.subr.bf16.mxu0 0
    %1246 = vmatpush2.bf16.msra.mxu0 %v952
    %1247 = vmatprep.subr.bf16.mxu0 0
    %1248 = vmatpush2.bf16.msra.mxu0 %v951
    %1249 = vmatprep.subr.bf16.mxu0 0
    %1250 = vmatpush2.bf16.msra.mxu0 %v950
    %1251 = vmatprep.subr.bf16.mxu0 0
    %1252 = vmatpush2.bf16.msra.mxu0 %v949
    %1253 = vmatprep.mubr.bf16.mxu0 %v384
    %1254 = vmatmul.mubr.bf16.gmra.mxu0 %v383
    %v1255 = vpop.f32.mrf.mxu0
    %v1256 = vadd.f32 %v1216, %v1255
    %v1257 = vpop.f32.mrf.mxu0
    %v1258 = vpop.f32.mrf.mxu0
    %v1259 = vpop.f32.mrf.mxu0
    %1260 = vdwg.mxu0
    %1261 = vmatprep.subr.bf16.mxu0 0
    %1262 = vmatpush1.bf16.msra.mxu0 %v964
    %1263 = vmatprep.subr.bf16.mxu0 0
    %1264 = vmatpush1.bf16.msra.mxu0 %v963
    %1265 = vmatprep.subr.bf16.mxu0 0
    %1266 = vmatpush1.bf16.msra.mxu0 %v962
    %1267 = vmatprep.subr.bf16.mxu0 0
    %1268 = vmatpush1.bf16.msra.mxu0 %v961
    %1269 = vmatprep.subr.bf16.mxu0 0
    %1270 = vmatpush1.bf16.msra.mxu0 %v960
    %1271 = vmatprep.subr.bf16.mxu0 0
    %1272 = vmatpush1.bf16.msra.mxu0 %v959
    %1273 = vmatprep.subr.bf16.mxu0 0
    %1274 = vmatpush1.bf16.msra.mxu0 %v958
    %1275 = vmatprep.subr.bf16.mxu0 0
    %1276 = vmatpush1.bf16.msra.mxu0 %v957
    %1277 = vmatprep.subr.bf16.mxu0 0
    %1278 = vmatpush2.bf16.msra.mxu0 %v972
    %1279 = vmatprep.subr.bf16.mxu0 0
    %1280 = vmatpush2.bf16.msra.mxu0 %v971
    %1281 = vmatprep.subr.bf16.mxu0 0
    %1282 = vmatpush2.bf16.msra.mxu0 %v970
    %1283 = vmatprep.subr.bf16.mxu0 0
    %1284 = vmatpush2.bf16.msra.mxu0 %v969
    %1285 = vmatprep.subr.bf16.mxu0 0
    %1286 = vmatpush2.bf16.msra.mxu0 %v968
    %1287 = vmatprep.subr.bf16.mxu0 0
    %1288 = vmatpush2.bf16.msra.mxu0 %v967
    %1289 = vmatprep.subr.bf16.mxu0 0
    %1290 = vmatpush2.bf16.msra.mxu0 %v966
    %1291 = vmatprep.subr.bf16.mxu0 0
    %1292 = vmatpush2.bf16.msra.mxu0 %v965
    %1293 = vmatprep.mubr.bf16.mxu0 %v386
    %1294 = vmatmul.mubr.bf16.gmra.mxu0 %v385
    %v1295 = vpop.f32.mrf.mxu0
    %v1296 = vadd.f32 %v1256, %v1295
    %v1297 = vpop.f32.mrf.mxu0
    %v1298 = vpop.f32.mrf.mxu0
    %v1299 = vpop.f32.mrf.mxu0
    %1300 = vdwg.mxu0
    %1301 = vmatprep.subr.bf16.mxu0 0
    %1302 = vmatpush1.bf16.msra.mxu0 %v980
    %1303 = vmatprep.subr.bf16.mxu0 0
    %1304 = vmatpush1.bf16.msra.mxu0 %v979
    %1305 = vmatprep.subr.bf16.mxu0 0
    %1306 = vmatpush1.bf16.msra.mxu0 %v978
    %1307 = vmatprep.subr.bf16.mxu0 0
    %1308 = vmatpush1.bf16.msra.mxu0 %v977
    %1309 = vmatprep.subr.bf16.mxu0 0
    %1310 = vmatpush1.bf16.msra.mxu0 %v976
    %1311 = vmatprep.subr.bf16.mxu0 0
    %1312 = vmatpush1.bf16.msra.mxu0 %v975
    %1313 = vmatprep.subr.bf16.mxu0 0
    %1314 = vmatpush1.bf16.msra.mxu0 %v974
    %1315 = vmatprep.subr.bf16.mxu0 0
    %1316 = vmatpush1.bf16.msra.mxu0 %v973
    %1317 = vmatprep.subr.bf16.mxu0 0
    %1318 = vmatpush2.bf16.msra.mxu0 %v988
    %1319 = vmatprep.subr.bf16.mxu0 0
    %1320 = vmatpush2.bf16.msra.mxu0 %v987
    %1321 = vmatprep.subr.bf16.mxu0 0
    %1322 = vmatpush2.bf16.msra.mxu0 %v986
    %1323 = vmatprep.subr.bf16.mxu0 0
    %1324 = vmatpush2.bf16.msra.mxu0 %v985
    %1325 = vmatprep.subr.bf16.mxu0 0
    %1326 = vmatpush2.bf16.msra.mxu0 %v984
    %1327 = vmatprep.subr.bf16.mxu0 0
    %1328 = vmatpush2.bf16.msra.mxu0 %v983
    %1329 = vmatprep.subr.bf16.mxu0 0
    %1330 = vmatpush2.bf16.msra.mxu0 %v982
    %1331 = vmatprep.subr.bf16.mxu0 0
    %1332 = vmatpush2.bf16.msra.mxu0 %v981
    %1333 = vmatprep.mubr.bf16.mxu0 %v388
    %1334 = vmatmul.mubr.bf16.gmra.mxu0 %v387
    %v1335 = vpop.f32.mrf.mxu0
    %v1336 = vadd.f32 %v1296, %v1335
    %v1337 = vpop.f32.mrf.mxu0
    %v1338 = vpop.f32.mrf.mxu0
    %v1339 = vpop.f32.mrf.mxu0
    %1340 = vdwg.mxu0
    %1341 = vmatprep.subr.bf16.mxu0 0
    %1342 = vmatpush1.bf16.msra.mxu0 %v996
    %1343 = vmatprep.subr.bf16.mxu0 0
    %1344 = vmatpush1.bf16.msra.mxu0 %v995
    %1345 = vmatprep.subr.bf16.mxu0 0
    %1346 = vmatpush1.bf16.msra.mxu0 %v994
    %1347 = vmatprep.subr.bf16.mxu0 0
    %1348 = vmatpush1.bf16.msra.mxu0 %v993
    %1349 = vmatprep.subr.bf16.mxu0 0
    %1350 = vmatpush1.bf16.msra.mxu0 %v992
    %1351 = vmatprep.subr.bf16.mxu0 0
    %1352 = vmatpush1.bf16.msra.mxu0 %v991
    %1353 = vmatprep.subr.bf16.mxu0 0
    %1354 = vmatpush1.bf16.msra.mxu0 %v990
    %1355 = vmatprep.subr.bf16.mxu0 0
    %1356 = vmatpush1.bf16.msra.mxu0 %v989
    %1357 = vmatprep.subr.bf16.mxu0 0
    %1358 = vmatpush2.bf16.msra.mxu0 %v1004
    %1359 = vmatprep.subr.bf16.mxu0 0
    %1360 = vmatpush2.bf16.msra.mxu0 %v1003
    %1361 = vmatprep.subr.bf16.mxu0 0
    %1362 = vmatpush2.bf16.msra.mxu0 %v1002
    %1363 = vmatprep.subr.bf16.mxu0 0
    %1364 = vmatpush2.bf16.msra.mxu0 %v1001
    %1365 = vmatprep.subr.bf16.mxu0 0
    %1366 = vmatpush2.bf16.msra.mxu0 %v1000
    %1367 = vmatprep.subr.bf16.mxu0 0
    %1368 = vmatpush2.bf16.msra.mxu0 %v999
    %1369 = vmatprep.subr.bf16.mxu0 0
    %1370 = vmatpush2.bf16.msra.mxu0 %v998
    %1371 = vmatprep.subr.bf16.mxu0 0
    %1372 = vmatpush2.bf16.msra.mxu0 %v997
    %1373 = vmatprep.mubr.bf16.mxu0 %v390
    %1374 = vmatmul.mubr.bf16.gmra.mxu0 %v389
    %v1375 = vpop.f32.mrf.mxu0
    %v1376 = vadd.f32 %v1336, %v1375
    %v1377 = vpop.f32.mrf.mxu0
    %v1378 = vpop.f32.mrf.mxu0
    %v1379 = vpop.f32.mrf.mxu0
    %1380 = vdwg.mxu0
    %1381 = vmatprep.subr.bf16.mxu0 0
    %1382 = vmatpush1.bf16.msra.mxu0 %v1012
    %1383 = vmatprep.subr.bf16.mxu0 0
    %1384 = vmatpush1.bf16.msra.mxu0 %v1011
    %1385 = vmatprep.subr.bf16.mxu0 0
    %1386 = vmatpush1.bf16.msra.mxu0 %v1010
    %1387 = vmatprep.subr.bf16.mxu0 0
    %1388 = vmatpush1.bf16.msra.mxu0 %v1009
    %1389 = vmatprep.subr.bf16.mxu0 0
    %1390 = vmatpush1.bf16.msra.mxu0 %v1008
    %1391 = vmatprep.subr.bf16.mxu0 0
    %1392 = vmatpush1.bf16.msra.mxu0 %v1007
    %1393 = vmatprep.subr.bf16.mxu0 0
    %1394 = vmatpush1.bf16.msra.mxu0 %v1006
    %1395 = vmatprep.subr.bf16.mxu0 0
    %1396 = vmatpush1.bf16.msra.mxu0 %v1005
    %1397 = vmatprep.subr.bf16.mxu0 0
    %1398 = vmatpush2.bf16.msra.mxu0 %v1020
    %1399 = vmatprep.subr.bf16.mxu0 0
    %1400 = vmatpush2.bf16.msra.mxu0 %v1019
    %1401 = vmatprep.subr.bf16.mxu0 0
    %1402 = vmatpush2.bf16.msra.mxu0 %v1018
    %1403 = vmatprep.subr.bf16.mxu0 0
    %1404 = vmatpush2.bf16.msra.mxu0 %v1017
    %1405 = vmatprep.subr.bf16.mxu0 0
    %1406 = vmatpush2.bf16.msra.mxu0 %v1016
    %1407 = vmatprep.subr.bf16.mxu0 0
    %1408 = vmatpush2.bf16.msra.mxu0 %v1015
    %1409 = vmatprep.subr.bf16.mxu0 0
    %1410 = vmatpush2.bf16.msra.mxu0 %v1014
    %1411 = vmatprep.subr.bf16.mxu0 0
    %1412 = vmatpush2.bf16.msra.mxu0 %v1013
    %1413 = vmatprep.mubr.bf16.mxu0 %v392
    %1414 = vmatmul.mubr.bf16.gmra.mxu0 %v391
    %v1415 = vpop.f32.mrf.mxu0
    %v1416 = vadd.f32 %v1376, %v1415
    %v1417 = vpop.f32.mrf.mxu0
    %v1418 = vpop.f32.mrf.mxu0
    %v1419 = vpop.f32.mrf.mxu0
    %1420 = vdwg.mxu0
    %1421 = vmatprep.subr.bf16.mxu0 0
    %1422 = vmatpush1.bf16.msra.mxu0 %v1028
    %1423 = vmatprep.subr.bf16.mxu0 0
    %1424 = vmatpush1.bf16.msra.mxu0 %v1027
    %1425 = vmatprep.subr.bf16.mxu0 0
    %1426 = vmatpush1.bf16.msra.mxu0 %v1026
    %1427 = vmatprep.subr.bf16.mxu0 0
    %1428 = vmatpush1.bf16.msra.mxu0 %v1025
    %1429 = vmatprep.subr.bf16.mxu0 0
    %1430 = vmatpush1.bf16.msra.mxu0 %v1024
    %1431 = vmatprep.subr.bf16.mxu0 0
    %1432 = vmatpush1.bf16.msra.mxu0 %v1023
    %1433 = vmatprep.subr.bf16.mxu0 0
    %1434 = vmatpush1.bf16.msra.mxu0 %v1022
    %1435 = vmatprep.subr.bf16.mxu0 0
    %1436 = vmatpush1.bf16.msra.mxu0 %v1021
    %1437 = vmatprep.subr.bf16.mxu0 0
    %1438 = vmatpush2.bf16.msra.mxu0 %v1036
    %1439 = vmatprep.subr.bf16.mxu0 0
    %1440 = vmatpush2.bf16.msra.mxu0 %v1035
    %1441 = vmatprep.subr.bf16.mxu0 0
    %1442 = vmatpush2.bf16.msra.mxu0 %v1034
    %1443 = vmatprep.subr.bf16.mxu0 0
    %1444 = vmatpush2.bf16.msra.mxu0 %v1033
    %1445 = vmatprep.subr.bf16.mxu0 0
    %1446 = vmatpush2.bf16.msra.mxu0 %v1032
    %1447 = vmatprep.subr.bf16.mxu0 0
    %1448 = vmatpush2.bf16.msra.mxu0 %v1031
    %1449 = vmatprep.subr.bf16.mxu0 0
    %1450 = vmatpush2.bf16.msra.mxu0 %v1030
    %1451 = vmatprep.subr.bf16.mxu0 0
    %1452 = vmatpush2.bf16.msra.mxu0 %v1029
    %1453 = vmatprep.mubr.bf16.mxu0 %v394
    %1454 = vmatmul.mubr.bf16.gmra.mxu0 %v393
    %v1455 = vpop.f32.mrf.mxu0
    %v1456 = vadd.f32 %v1416, %v1455
    %v1457 = vpop.f32.mrf.mxu0
    %v1458 = vpop.f32.mrf.mxu0
    %v1459 = vpop.f32.mrf.mxu0
    %1460 = vdwg.mxu0
    %1461 = vmatprep.subr.bf16.mxu0 0
    %1462 = vmatpush1.bf16.msra.mxu0 %v1044
    %1463 = vmatprep.subr.bf16.mxu0 0
    %1464 = vmatpush1.bf16.msra.mxu0 %v1043
    %1465 = vmatprep.subr.bf16.mxu0 0
    %1466 = vmatpush1.bf16.msra.mxu0 %v1042
    %1467 = vmatprep.subr.bf16.mxu0 0
    %1468 = vmatpush1.bf16.msra.mxu0 %v1041
    %1469 = vmatprep.subr.bf16.mxu0 0
    %1470 = vmatpush1.bf16.msra.mxu0 %v1040
    %1471 = vmatprep.subr.bf16.mxu0 0
    %1472 = vmatpush1.bf16.msra.mxu0 %v1039
    %1473 = vmatprep.subr.bf16.mxu0 0
    %1474 = vmatpush1.bf16.msra.mxu0 %v1038
    %1475 = vmatprep.subr.bf16.mxu0 0
    %1476 = vmatpush1.bf16.msra.mxu0 %v1037
    %1477 = vmatprep.subr.bf16.mxu0 0
    %1478 = vmatpush2.bf16.msra.mxu0 %v1052
    %1479 = vmatprep.subr.bf16.mxu0 0
    %1480 = vmatpush2.bf16.msra.mxu0 %v1051
    %1481 = vmatprep.subr.bf16.mxu0 0
    %1482 = vmatpush2.bf16.msra.mxu0 %v1050
    %1483 = vmatprep.subr.bf16.mxu0 0
    %1484 = vmatpush2.bf16.msra.mxu0 %v1049
    %1485 = vmatprep.subr.bf16.mxu0 0
    %1486 = vmatpush2.bf16.msra.mxu0 %v1048
    %1487 = vmatprep.subr.bf16.mxu0 0
    %1488 = vmatpush2.bf16.msra.mxu0 %v1047
    %1489 = vmatprep.subr.bf16.mxu0 0
    %1490 = vmatpush2.bf16.msra.mxu0 %v1046
    %1491 = vmatprep.subr.bf16.mxu0 0
    %1492 = vmatpush2.bf16.msra.mxu0 %v1045
    %1493 = vmatprep.mubr.bf16.mxu0 %v396
    %1494 = vmatmul.mubr.bf16.gmra.mxu0 %v395
    %v1495 = vpop.f32.mrf.mxu0
    %v1496 = vadd.f32 %v1456, %v1495
    %v1497 = vpop.f32.mrf.mxu0
    %v1498 = vpop.f32.mrf.mxu0
    %v1499 = vpop.f32.mrf.mxu0
    %1500 = vdwg.mxu0
    %v1501 = vld [vmem:[%s1] sm:$0xff]
    %v1502 = vld [vmem:[%s1 + $0x8] sm:$0xff]
    %v1503 = vld [vmem:[%s1 + $0x10] sm:$0xff]
    %v1504 = vld [vmem:[#allocation4] sm:$0xf]
    %v1505 = vld [vmem:[#allocation4 + $0x4] sm:$0xf]
    %v1506 = vld [vmem:[#allocation4 + $0x8] sm:$0xf]
    %v1507 = vld [vmem:[#allocation4 + $0xc] sm:$0xf]
    %v1508 = vld [vmem:[#allocation4 + $0x10] sm:$0xf]
    %v1509 = vld [vmem:[#allocation4 + $0x14] sm:$0xf]
    %v1510 = vld [vmem:[#allocation4 + $0x18] sm:$0xf]
    %v1511 = vld [vmem:[#allocation4 + $0x1c] sm:$0xf]
    %v1512 = vld [vmem:[#allocation4 + $0x20] sm:$0xf]
    %v1513 = vld [vmem:[#allocation4 + $0x24] sm:$0xf]
    %v1514 = vld [vmem:[#allocation4 + $0x28] sm:$0xf]
    %v1515 = vld [vmem:[#allocation4 + $0x2c] sm:$0xf]
    %v1516 = vld [vmem:[#allocation4 + $0x30] sm:$0xf]
    %v1517 = vld [vmem:[#allocation4 + $0x34] sm:$0xf]
    %v1518 = vld [vmem:[#allocation4 + $0x38] sm:$0xf]
    %v1519 = vld [vmem:[#allocation4 + $0x3c] sm:$0xf]
    %v1520 = vld [vmem:[#allocation4 + $0x40] sm:$0xf]
    %v1521 = vld [vmem:[#allocation4 + $0x44] sm:$0xf]
    %v1522 = vld [vmem:[#allocation4 + $0x48] sm:$0xf]
    %v1523 = vld [vmem:[#allocation4 + $0x4c] sm:$0xf]
    %v1524 = vld [vmem:[#allocation4 + $0x50] sm:$0xf]
    %v1525 = vld [vmem:[#allocation4 + $0x54] sm:$0xf]
    %v1526 = vld [vmem:[#allocation4 + $0x58] sm:$0xf]
    %v1527 = vld [vmem:[#allocation4 + $0x5c] sm:$0xf]
    %v1528 = vld [vmem:[#allocation4 + $0x60] sm:$0xf]
    %v1529 = vld [vmem:[#allocation4 + $0x64] sm:$0xf]
    %v1530 = vld [vmem:[#allocation4 + $0x68] sm:$0xf]
    %v1531 = vld [vmem:[#allocation4 + $0x6c] sm:$0xf]
    %v1532 = vld [vmem:[#allocation4 + $0x70] sm:$0xf]
    %v1533 = vld [vmem:[#allocation4 + $0x74] sm:$0xf]
    %v1534 = vld [vmem:[#allocation4 + $0x78] sm:$0xf]
    %v1535 = vld [vmem:[#allocation4 + $0x7c] sm:$0xf]
    %v1536 = vld [vmem:[#allocation4 + $0x80] sm:$0xf]
    %v1537 = vld [vmem:[#allocation4 + $0x84] sm:$0xf]
    %v1538 = vld [vmem:[#allocation4 + $0x88] sm:$0xf]
    %v1539 = vld [vmem:[#allocation4 + $0x8c] sm:$0xf]
    %v1540 = vld [vmem:[#allocation4 + $0x90] sm:$0xf]
    %v1541 = vld [vmem:[#allocation4 + $0x94] sm:$0xf]
    %v1542 = vld [vmem:[#allocation4 + $0x98] sm:$0xf]
    %v1543 = vld [vmem:[#allocation4 + $0x9c] sm:$0xf]
    %v1544 = vld [vmem:[#allocation4 + $0xa0] sm:$0xf]
    %v1545 = vld [vmem:[#allocation4 + $0xa4] sm:$0xf]
    %v1546 = vld [vmem:[#allocation4 + $0xa8] sm:$0xf]
    %v1547 = vld [vmem:[#allocation4 + $0xac] sm:$0xf]
    %v1548 = vld [vmem:[#allocation4 + $0xb0] sm:$0xf]
    %v1549 = vld [vmem:[#allocation4 + $0xb4] sm:$0xf]
    %v1550 = vld [vmem:[#allocation4 + $0xb8] sm:$0xf]
    %v1551 = vld [vmem:[#allocation4 + $0xbc] sm:$0xf]
    %v1552 = vld [vmem:[#allocation4 + $0xc0] sm:$0xf]
    %v1553 = vld [vmem:[#allocation4 + $0xc4] sm:$0xf]
    %v1554 = vld [vmem:[#allocation4 + $0xc8] sm:$0xf]
    %v1555 = vld [vmem:[#allocation4 + $0xcc] sm:$0xf]
    %v1556 = vld [vmem:[#allocation4 + $0xd0] sm:$0xf]
    %v1557 = vld [vmem:[#allocation4 + $0xd4] sm:$0xf]
    %v1558 = vld [vmem:[#allocation4 + $0xd8] sm:$0xf]
    %v1559 = vld [vmem:[#allocation4 + $0xdc] sm:$0xf]
    %v1560 = vld [vmem:[#allocation4 + $0xe0] sm:$0xf]
    %v1561 = vld [vmem:[#allocation4 + $0xe4] sm:$0xf]
    %v1562 = vld [vmem:[#allocation4 + $0xe8] sm:$0xf]
    %v1563 = vld [vmem:[#allocation4 + $0xec] sm:$0xf]
    %v1564 = vld [vmem:[#allocation4 + $0xf0] sm:$0xf]
    %v1565 = vld [vmem:[#allocation4 + $0xf4] sm:$0xf]
    %v1566 = vld [vmem:[#allocation4 + $0xf8] sm:$0xf]
    %v1567 = vld [vmem:[#allocation4 + $0xfc] sm:$0xf]
    %v1568 = vld [vmem:[#allocation4 + $0x100] sm:$0xf]
    %v1569 = vld [vmem:[#allocation4 + $0x104] sm:$0xf]
    %v1570 = vld [vmem:[#allocation4 + $0x108] sm:$0xf]
    %v1571 = vld [vmem:[#allocation4 + $0x10c] sm:$0xf]
    %v1572 = vld [vmem:[#allocation4 + $0x110] sm:$0xf]
    %v1573 = vld [vmem:[#allocation4 + $0x114] sm:$0xf]
    %v1574 = vld [vmem:[#allocation4 + $0x118] sm:$0xf]
    %v1575 = vld [vmem:[#allocation4 + $0x11c] sm:$0xf]
    %v1576 = vld [vmem:[#allocation4 + $0x120] sm:$0xf]
    %v1577 = vld [vmem:[#allocation4 + $0x124] sm:$0xf]
    %v1578 = vld [vmem:[#allocation4 + $0x128] sm:$0xf]
    %v1579 = vld [vmem:[#allocation4 + $0x12c] sm:$0xf]
    %v1580 = vld [vmem:[#allocation4 + $0x130] sm:$0xf]
    %v1581 = vld [vmem:[#allocation4 + $0x134] sm:$0xf]
    %v1582 = vld [vmem:[#allocation4 + $0x138] sm:$0xf]
    %v1583 = vld [vmem:[#allocation4 + $0x13c] sm:$0xf]
    %v1584 = vld [vmem:[#allocation4 + $0x140] sm:$0xf]
    %v1585 = vld [vmem:[#allocation4 + $0x144] sm:$0xf]
    %v1586 = vld [vmem:[#allocation4 + $0x148] sm:$0xf]
    %v1587 = vld [vmem:[#allocation4 + $0x14c] sm:$0xf]
    %v1588 = vld [vmem:[#allocation4 + $0x150] sm:$0xf]
    %v1589 = vld [vmem:[#allocation4 + $0x154] sm:$0xf]
    %v1590 = vld [vmem:[#allocation4 + $0x158] sm:$0xf]
    %v1591 = vld [vmem:[#allocation4 + $0x15c] sm:$0xf]
    %v1592 = vld [vmem:[#allocation4 + $0x160] sm:$0xf]
    %v1593 = vld [vmem:[#allocation4 + $0x164] sm:$0xf]
    %v1594 = vld [vmem:[#allocation4 + $0x168] sm:$0xf]
    %v1595 = vld [vmem:[#allocation4 + $0x16c] sm:$0xf]
    %v1596 = vld [vmem:[#allocation4 + $0x170] sm:$0xf]
    %v1597 = vld [vmem:[#allocation4 + $0x174] sm:$0xf]
    %v1598 = vld [vmem:[#allocation4 + $0x178] sm:$0xf]
    %v1599 = vld [vmem:[#allocation4 + $0x17c] sm:$0xf]
    %v1600 = vld [vmem:[%s6] sm:$0x1]
    %v1602 = vlaneseq
    %v1603 = vshrl.u32 %v1602, 7
    %v1604 = vsub.s32 0, %v1603
    %v1605 = vrot.slane %v1600, %v1604
    %v1610 = vunpack.c.l.b16 %v1501
    %v1611 = vunpack.c.h.b16 %v1501
    %v1612 = vunpack.c.l.b16 %v1502
    %v1613 = vunpack.c.h.b16 %v1502
    %v1614 = vunpack.c.l.b16 %v1503
    %v1615 = vunpack.c.h.b16 %v1503
    %v1616 = vpack.c.b16 %v1610, %v1610
    %v1617 = vpack.c.b16 %v1611, %v1611
    %v1618 = vpack.c.b16 %v1612, %v1612
    %v1619 = vpack.c.b16 %v1613, %v1613
    %v1620 = vpack.c.b16 %v1614, %v1614
    %v1621 = vpack.c.b16 %v1615, %v1615
    %v1724 = vunpack.c.l.b16 %v1504
    %v1725 = vunpack.c.l.b16 %v1505
    %v1726 = vunpack.c.l.b16 %v1506
    %v1727 = vunpack.c.l.b16 %v1507
    %v1728 = vunpack.c.l.b16 %v1508
    %v1729 = vunpack.c.l.b16 %v1509
    %v1730 = vunpack.c.l.b16 %v1510
    %v1731 = vunpack.c.l.b16 %v1511
    %v1732 = vunpack.c.l.b16 %v1512
    %v1733 = vunpack.c.l.b16 %v1513
    %v1734 = vunpack.c.l.b16 %v1514
    %v1735 = vunpack.c.l.b16 %v1515
    %v1736 = vunpack.c.l.b16 %v1516
    %v1737 = vunpack.c.l.b16 %v1517
    %v1738 = vunpack.c.l.b16 %v1518
    %v1739 = vunpack.c.l.b16 %v1519
    %v1740 = vunpack.c.l.b16 %v1520
    %v1741 = vunpack.c.l.b16 %v1521
    %v1742 = vunpack.c.l.b16 %v1522
    %v1743 = vunpack.c.l.b16 %v1523
    %v1744 = vunpack.c.l.b16 %v1524
    %v1745 = vunpack.c.l.b16 %v1525
    %v1746 = vunpack.c.l.b16 %v1526
    %v1747 = vunpack.c.l.b16 %v1527
    %v1748 = vunpack.c.l.b16 %v1528
    %v1749 = vunpack.c.l.b16 %v1529
    %v1750 = vunpack.c.l.b16 %v1530
    %v1751 = vunpack.c.l.b16 %v1531
    %v1752 = vunpack.c.l.b16 %v1532
    %v1753 = vunpack.c.l.b16 %v1533
    %v1754 = vunpack.c.l.b16 %v1534
    %v1755 = vunpack.c.l.b16 %v1535
    %v1756 = vunpack.c.l.b16 %v1536
    %v1757 = vunpack.c.l.b16 %v1537
    %v1758 = vunpack.c.l.b16 %v1538
    %v1759 = vunpack.c.l.b16 %v1539
    %v1760 = vunpack.c.l.b16 %v1540
    %v1761 = vunpack.c.l.b16 %v1541
    %v1762 = vunpack.c.l.b16 %v1542
    %v1763 = vunpack.c.l.b16 %v1543
    %v1764 = vunpack.c.l.b16 %v1544
    %v1765 = vunpack.c.l.b16 %v1545
    %v1766 = vunpack.c.l.b16 %v1546
    %v1767 = vunpack.c.l.b16 %v1547
    %v1768 = vunpack.c.l.b16 %v1548
    %v1769 = vunpack.c.l.b16 %v1549
    %v1770 = vunpack.c.l.b16 %v1550
    %v1771 = vunpack.c.l.b16 %v1551
    %v1772 = vunpack.c.l.b16 %v1552
    %v1773 = vunpack.c.l.b16 %v1553
    %v1774 = vunpack.c.l.b16 %v1554
    %v1775 = vunpack.c.l.b16 %v1555
    %v1776 = vunpack.c.l.b16 %v1556
    %v1777 = vunpack.c.l.b16 %v1557
    %v1778 = vunpack.c.l.b16 %v1558
    %v1779 = vunpack.c.l.b16 %v1559
    %v1780 = vunpack.c.l.b16 %v1560
    %v1781 = vunpack.c.l.b16 %v1561
    %v1782 = vunpack.c.l.b16 %v1562
    %v1783 = vunpack.c.l.b16 %v1563
    %v1784 = vunpack.c.l.b16 %v1564
    %v1785 = vunpack.c.l.b16 %v1565
    %v1786 = vunpack.c.l.b16 %v1566
    %v1787 = vunpack.c.l.b16 %v1567
    %v1788 = vunpack.c.l.b16 %v1568
    %v1789 = vunpack.c.l.b16 %v1569
    %v1790 = vunpack.c.l.b16 %v1570
    %v1791 = vunpack.c.l.b16 %v1571
    %v1792 = vunpack.c.l.b16 %v1572
    %v1793 = vunpack.c.l.b16 %v1573
    %v1794 = vunpack.c.l.b16 %v1574
    %v1795 = vunpack.c.l.b16 %v1575
    %v1796 = vunpack.c.l.b16 %v1576
    %v1797 = vunpack.c.l.b16 %v1577
    %v1798 = vunpack.c.l.b16 %v1578
    %v1799 = vunpack.c.l.b16 %v1579
    %v1800 = vunpack.c.l.b16 %v1580
    %v1801 = vunpack.c.l.b16 %v1581
    %v1802 = vunpack.c.l.b16 %v1582
    %v1803 = vunpack.c.l.b16 %v1583
    %v1804 = vunpack.c.l.b16 %v1584
    %v1805 = vunpack.c.l.b16 %v1585
    %v1806 = vunpack.c.l.b16 %v1586
    %v1807 = vunpack.c.l.b16 %v1587
    %v1808 = vunpack.c.l.b16 %v1588
    %v1809 = vunpack.c.l.b16 %v1589
    %v1810 = vunpack.c.l.b16 %v1590
    %v1811 = vunpack.c.l.b16 %v1591
    %v1812 = vunpack.c.l.b16 %v1592
    %v1813 = vunpack.c.l.b16 %v1593
    %v1814 = vunpack.c.l.b16 %v1594
    %v1815 = vunpack.c.l.b16 %v1595
    %v1816 = vunpack.c.l.b16 %v1596
    %v1817 = vunpack.c.l.b16 %v1597
    %v1818 = vunpack.c.l.b16 %v1598
    %v1819 = vunpack.c.l.b16 %v1599
    %v1820 = vpack.c.b16 %v1725, %v1724
    %v1821 = vpack.c.b16 %v1727, %v1726
    %v1822 = vpack.c.b16 %v1729, %v1728
    %v1823 = vpack.c.b16 %v1731, %v1730
    %v1824 = vpack.c.b16 %v1733, %v1732
    %v1825 = vpack.c.b16 %v1735, %v1734
    %v1826 = vpack.c.b16 %v1737, %v1736
    %v1827 = vpack.c.b16 %v1739, %v1738
    %v1828 = vpack.c.b16 %v1741, %v1740
    %v1829 = vpack.c.b16 %v1743, %v1742
    %v1830 = vpack.c.b16 %v1745, %v1744
    %v1831 = vpack.c.b16 %v1747, %v1746
    %v1832 = vpack.c.b16 %v1749, %v1748
    %v1833 = vpack.c.b16 %v1751, %v1750
    %v1834 = vpack.c.b16 %v1753, %v1752
    %v1835 = vpack.c.b16 %v1755, %v1754
    %v1836 = vpack.c.b16 %v1757, %v1756
    %v1837 = vpack.c.b16 %v1759, %v1758
    %v1838 = vpack.c.b16 %v1761, %v1760
    %v1839 = vpack.c.b16 %v1763, %v1762
    %v1840 = vpack.c.b16 %v1765, %v1764
    %v1841 = vpack.c.b16 %v1767, %v1766
    %v1842 = vpack.c.b16 %v1769, %v1768
    %v1843 = vpack.c.b16 %v1771, %v1770
    %v1844 = vpack.c.b16 %v1773, %v1772
    %v1845 = vpack.c.b16 %v1775, %v1774
    %v1846 = vpack.c.b16 %v1777, %v1776
    %v1847 = vpack.c.b16 %v1779, %v1778
    %v1848 = vpack.c.b16 %v1781, %v1780
    %v1849 = vpack.c.b16 %v1783, %v1782
    %v1850 = vpack.c.b16 %v1785, %v1784
    %v1851 = vpack.c.b16 %v1787, %v1786
    %v1852 = vpack.c.b16 %v1789, %v1788
    %v1853 = vpack.c.b16 %v1791, %v1790
    %v1854 = vpack.c.b16 %v1793, %v1792
    %v1855 = vpack.c.b16 %v1795, %v1794
    %v1856 = vpack.c.b16 %v1797, %v1796
    %v1857 = vpack.c.b16 %v1799, %v1798
    %v1858 = vpack.c.b16 %v1801, %v1800
    %v1859 = vpack.c.b16 %v1803, %v1802
    %v1860 = vpack.c.b16 %v1805, %v1804
    %v1861 = vpack.c.b16 %v1807, %v1806
    %v1862 = vpack.c.b16 %v1809, %v1808
    %v1863 = vpack.c.b16 %v1811, %v1810
    %v1864 = vpack.c.b16 %v1813, %v1812
    %v1865 = vpack.c.b16 %v1815, %v1814
    %v1866 = vpack.c.b16 %v1817, %v1816
    %v1867 = vpack.c.b16 %v1819, %v1818
    %1916 = vmatprep.subr.bf16.mxu0 0
    %1917 = vmatpush1.bf16.msra.mxu0 %v1827
    %1918 = vmatprep.subr.bf16.mxu0 0
    %1919 = vmatpush1.bf16.msra.mxu0 %v1826
    %1920 = vmatprep.subr.bf16.mxu0 0
    %1921 = vmatpush1.bf16.msra.mxu0 %v1825
    %1922 = vmatprep.subr.bf16.mxu0 0
    %1923 = vmatpush1.bf16.msra.mxu0 %v1824
    %1924 = vmatprep.subr.bf16.mxu0 0
    %1925 = vmatpush1.bf16.msra.mxu0 %v1823
    %1926 = vmatprep.subr.bf16.mxu0 0
    %1927 = vmatpush1.bf16.msra.mxu0 %v1822
    %1928 = vmatprep.subr.bf16.mxu0 0
    %1929 = vmatpush1.bf16.msra.mxu0 %v1821
    %1930 = vmatprep.subr.bf16.mxu0 0
    %1931 = vmatpush1.bf16.msra.mxu0 %v1820
    %1932 = vmatprep.subr.bf16.mxu0 0
    %1933 = vmatpush2.bf16.msra.mxu0 %v1835
    %1934 = vmatprep.subr.bf16.mxu0 0
    %1935 = vmatpush2.bf16.msra.mxu0 %v1834
    %1936 = vmatprep.subr.bf16.mxu0 0
    %1937 = vmatpush2.bf16.msra.mxu0 %v1833
    %1938 = vmatprep.subr.bf16.mxu0 0
    %1939 = vmatpush2.bf16.msra.mxu0 %v1832
    %1940 = vmatprep.subr.bf16.mxu0 0
    %1941 = vmatpush2.bf16.msra.mxu0 %v1831
    %1942 = vmatprep.subr.bf16.mxu0 0
    %1943 = vmatpush2.bf16.msra.mxu0 %v1830
    %1944 = vmatprep.subr.bf16.mxu0 0
    %1945 = vmatpush2.bf16.msra.mxu0 %v1829
    %1946 = vmatprep.subr.bf16.mxu0 0
    %1947 = vmatpush2.bf16.msra.mxu0 %v1828
    %1948 = vmatprep.mubr.bf16.mxu0 %v1617
    %1949 = vmatmul.mubr.bf16.gmra.mxu0 %v1616
    %v1950 = vpop.f32.mrf.mxu0
    %v1951 = vadd.f32 %v1605, %v1950
    %v1952 = vpop.f32.mrf.mxu0
    %v1953 = vpop.f32.mrf.mxu0
    %v1954 = vpop.f32.mrf.mxu0
    %1955 = vdwg.mxu0
    %1956 = vmatprep.subr.bf16.mxu0 0
    %1957 = vmatpush1.bf16.msra.mxu0 %v1843
    %1958 = vmatprep.subr.bf16.mxu0 0
    %1959 = vmatpush1.bf16.msra.mxu0 %v1842
    %1960 = vmatprep.subr.bf16.mxu0 0
    %1961 = vmatpush1.bf16.msra.mxu0 %v1841
    %1962 = vmatprep.subr.bf16.mxu0 0
    %1963 = vmatpush1.bf16.msra.mxu0 %v1840
    %1964 = vmatprep.subr.bf16.mxu0 0
    %1965 = vmatpush1.bf16.msra.mxu0 %v1839
    %1966 = vmatprep.subr.bf16.mxu0 0
    %1967 = vmatpush1.bf16.msra.mxu0 %v1838
    %1968 = vmatprep.subr.bf16.mxu0 0
    %1969 = vmatpush1.bf16.msra.mxu0 %v1837
    %1970 = vmatprep.subr.bf16.mxu0 0
    %1971 = vmatpush1.bf16.msra.mxu0 %v1836
    %1972 = vmatprep.subr.bf16.mxu0 0
    %1973 = vmatpush2.bf16.msra.mxu0 %v1851
    %1974 = vmatprep.subr.bf16.mxu0 0
    %1975 = vmatpush2.bf16.msra.mxu0 %v1850
    %1976 = vmatprep.subr.bf16.mxu0 0
    %1977 = vmatpush2.bf16.msra.mxu0 %v1849
    %1978 = vmatprep.subr.bf16.mxu0 0
    %1979 = vmatpush2.bf16.msra.mxu0 %v1848
    %1980 = vmatprep.subr.bf16.mxu0 0
    %1981 = vmatpush2.bf16.msra.mxu0 %v1847
    %1982 = vmatprep.subr.bf16.mxu0 0
    %1983 = vmatpush2.bf16.msra.mxu0 %v1846
    %1984 = vmatprep.subr.bf16.mxu0 0
    %1985 = vmatpush2.bf16.msra.mxu0 %v1845
    %1986 = vmatprep.subr.bf16.mxu0 0
    %1987 = vmatpush2.bf16.msra.mxu0 %v1844
    %1988 = vmatprep.mubr.bf16.mxu0 %v1619
    %1989 = vmatmul.mubr.bf16.gmra.mxu0 %v1618
    %v1990 = vpop.f32.mrf.mxu0
    %v1991 = vadd.f32 %v1951, %v1990
    %v1992 = vpop.f32.mrf.mxu0
    %v1993 = vpop.f32.mrf.mxu0
    %v1994 = vpop.f32.mrf.mxu0
    %1995 = vdwg.mxu0
    %1996 = vmatprep.subr.bf16.mxu0 0
    %1997 = vmatpush1.bf16.msra.mxu0 %v1859
    %1998 = vmatprep.subr.bf16.mxu0 0
    %1999 = vmatpush1.bf16.msra.mxu0 %v1858
    %2000 = vmatprep.subr.bf16.mxu0 0
    %2001 = vmatpush1.bf16.msra.mxu0 %v1857
    %2002 = vmatprep.subr.bf16.mxu0 0
    %2003 = vmatpush1.bf16.msra.mxu0 %v1856
    %2004 = vmatprep.subr.bf16.mxu0 0
    %2005 = vmatpush1.bf16.msra.mxu0 %v1855
    %2006 = vmatprep.subr.bf16.mxu0 0
    %2007 = vmatpush1.bf16.msra.mxu0 %v1854
    %2008 = vmatprep.subr.bf16.mxu0 0
    %2009 = vmatpush1.bf16.msra.mxu0 %v1853
    %2010 = vmatprep.subr.bf16.mxu0 0
    %2011 = vmatpush1.bf16.msra.mxu0 %v1852
    %2012 = vmatprep.subr.bf16.mxu0 0
    %2013 = vmatpush2.bf16.msra.mxu0 %v1867
    %2014 = vmatprep.subr.bf16.mxu0 0
    %2015 = vmatpush2.bf16.msra.mxu0 %v1866
    %2016 = vmatprep.subr.bf16.mxu0 0
    %2017 = vmatpush2.bf16.msra.mxu0 %v1865
    %2018 = vmatprep.subr.bf16.mxu0 0
    %2019 = vmatpush2.bf16.msra.mxu0 %v1864
    %2020 = vmatprep.subr.bf16.mxu0 0
    %2021 = vmatpush2.bf16.msra.mxu0 %v1863
    %2022 = vmatprep.subr.bf16.mxu0 0
    %2023 = vmatpush2.bf16.msra.mxu0 %v1862
    %2024 = vmatprep.subr.bf16.mxu0 0
    %2025 = vmatpush2.bf16.msra.mxu0 %v1861
    %2026 = vmatprep.subr.bf16.mxu0 0
    %2027 = vmatpush2.bf16.msra.mxu0 %v1860
    %2028 = vmatprep.mubr.bf16.mxu0 %v1621
    %2029 = vmatmul.mubr.bf16.gmra.mxu0 %v1620
    %v2030 = vpop.f32.mrf.mxu0
    %v2031 = vadd.f32 %v1991, %v2030
    %v2032 = vpop.f32.mrf.mxu0
    %v2033 = vpop.f32.mrf.mxu0
    %v2034 = vpop.f32.mrf.mxu0
    %2035 = vdwg.mxu0
    %v2036 = vld [vmem:[%s2] sm:$0xff]
    %v2037 = vld [vmem:[%s2 + $0x8] sm:$0xff]
    %v2038 = vld [vmem:[%s2 + $0x10] sm:$0xff]
    %v2039 = vld [vmem:[#allocation6] sm:$0xf]
    %v2040 = vld [vmem:[#allocation6 + $0x4] sm:$0xf]
    %v2041 = vld [vmem:[#allocation6 + $0x8] sm:$0xf]
    %v2042 = vld [vmem:[#allocation6 + $0xc] sm:$0xf]
    %v2043 = vld [vmem:[#allocation6 + $0x10] sm:$0xf]
    %v2044 = vld [vmem:[#allocation6 + $0x14] sm:$0xf]
    %v2045 = vld [vmem:[#allocation6 + $0x18] sm:$0xf]
    %v2046 = vld [vmem:[#allocation6 + $0x1c] sm:$0xf]
    %v2047 = vld [vmem:[#allocation6 + $0x20] sm:$0xf]
    %v2048 = vld [vmem:[#allocation6 + $0x24] sm:$0xf]
    %v2049 = vld [vmem:[#allocation6 + $0x28] sm:$0xf]
    %v2050 = vld [vmem:[#allocation6 + $0x2c] sm:$0xf]
    %v2051 = vld [vmem:[#allocation6 + $0x30] sm:$0xf]
    %v2052 = vld [vmem:[#allocation6 + $0x34] sm:$0xf]
    %v2053 = vld [vmem:[#allocation6 + $0x38] sm:$0xf]
    %v2054 = vld [vmem:[#allocation6 + $0x3c] sm:$0xf]
    %v2055 = vld [vmem:[#allocation6 + $0x40] sm:$0xf]
    %v2056 = vld [vmem:[#allocation6 + $0x44] sm:$0xf]
    %v2057 = vld [vmem:[#allocation6 + $0x48] sm:$0xf]
    %v2058 = vld [vmem:[#allocation6 + $0x4c] sm:$0xf]
    %v2059 = vld [vmem:[#allocation6 + $0x50] sm:$0xf]
    %v2060 = vld [vmem:[#allocation6 + $0x54] sm:$0xf]
    %v2061 = vld [vmem:[#allocation6 + $0x58] sm:$0xf]
    %v2062 = vld [vmem:[#allocation6 + $0x5c] sm:$0xf]
    %v2063 = vld [vmem:[#allocation6 + $0x60] sm:$0xf]
    %v2064 = vld [vmem:[#allocation6 + $0x64] sm:$0xf]
    %v2065 = vld [vmem:[#allocation6 + $0x68] sm:$0xf]
    %v2066 = vld [vmem:[#allocation6 + $0x6c] sm:$0xf]
    %v2067 = vld [vmem:[#allocation6 + $0x70] sm:$0xf]
    %v2068 = vld [vmem:[#allocation6 + $0x74] sm:$0xf]
    %v2069 = vld [vmem:[#allocation6 + $0x78] sm:$0xf]
    %v2070 = vld [vmem:[#allocation6 + $0x7c] sm:$0xf]
    %v2071 = vld [vmem:[#allocation6 + $0x80] sm:$0xf]
    %v2072 = vld [vmem:[#allocation6 + $0x84] sm:$0xf]
    %v2073 = vld [vmem:[#allocation6 + $0x88] sm:$0xf]
    %v2074 = vld [vmem:[#allocation6 + $0x8c] sm:$0xf]
    %v2075 = vld [vmem:[#allocation6 + $0x90] sm:$0xf]
    %v2076 = vld [vmem:[#allocation6 + $0x94] sm:$0xf]
    %v2077 = vld [vmem:[#allocation6 + $0x98] sm:$0xf]
    %v2078 = vld [vmem:[#allocation6 + $0x9c] sm:$0xf]
    %v2079 = vld [vmem:[#allocation6 + $0xa0] sm:$0xf]
    %v2080 = vld [vmem:[#allocation6 + $0xa4] sm:$0xf]
    %v2081 = vld [vmem:[#allocation6 + $0xa8] sm:$0xf]
    %v2082 = vld [vmem:[#allocation6 + $0xac] sm:$0xf]
    %v2083 = vld [vmem:[#allocation6 + $0xb0] sm:$0xf]
    %v2084 = vld [vmem:[#allocation6 + $0xb4] sm:$0xf]
    %v2085 = vld [vmem:[#allocation6 + $0xb8] sm:$0xf]
    %v2086 = vld [vmem:[#allocation6 + $0xbc] sm:$0xf]
    %v2087 = vld [vmem:[#allocation6 + $0xc0] sm:$0xf]
    %v2088 = vld [vmem:[#allocation6 + $0xc4] sm:$0xf]
    %v2089 = vld [vmem:[#allocation6 + $0xc8] sm:$0xf]
    %v2090 = vld [vmem:[#allocation6 + $0xcc] sm:$0xf]
    %v2091 = vld [vmem:[#allocation6 + $0xd0] sm:$0xf]
    %v2092 = vld [vmem:[#allocation6 + $0xd4] sm:$0xf]
    %v2093 = vld [vmem:[#allocation6 + $0xd8] sm:$0xf]
    %v2094 = vld [vmem:[#allocation6 + $0xdc] sm:$0xf]
    %v2095 = vld [vmem:[#allocation6 + $0xe0] sm:$0xf]
    %v2096 = vld [vmem:[#allocation6 + $0xe4] sm:$0xf]
    %v2097 = vld [vmem:[#allocation6 + $0xe8] sm:$0xf]
    %v2098 = vld [vmem:[#allocation6 + $0xec] sm:$0xf]
    %v2099 = vld [vmem:[#allocation6 + $0xf0] sm:$0xf]
    %v2100 = vld [vmem:[#allocation6 + $0xf4] sm:$0xf]
    %v2101 = vld [vmem:[#allocation6 + $0xf8] sm:$0xf]
    %v2102 = vld [vmem:[#allocation6 + $0xfc] sm:$0xf]
    %v2103 = vld [vmem:[#allocation6 + $0x100] sm:$0xf]
    %v2104 = vld [vmem:[#allocation6 + $0x104] sm:$0xf]
    %v2105 = vld [vmem:[#allocation6 + $0x108] sm:$0xf]
    %v2106 = vld [vmem:[#allocation6 + $0x10c] sm:$0xf]
    %v2107 = vld [vmem:[#allocation6 + $0x110] sm:$0xf]
    %v2108 = vld [vmem:[#allocation6 + $0x114] sm:$0xf]
    %v2109 = vld [vmem:[#allocation6 + $0x118] sm:$0xf]
    %v2110 = vld [vmem:[#allocation6 + $0x11c] sm:$0xf]
    %v2111 = vld [vmem:[#allocation6 + $0x120] sm:$0xf]
    %v2112 = vld [vmem:[#allocation6 + $0x124] sm:$0xf]
    %v2113 = vld [vmem:[#allocation6 + $0x128] sm:$0xf]
    %v2114 = vld [vmem:[#allocation6 + $0x12c] sm:$0xf]
    %v2115 = vld [vmem:[#allocation6 + $0x130] sm:$0xf]
    %v2116 = vld [vmem:[#allocation6 + $0x134] sm:$0xf]
    %v2117 = vld [vmem:[#allocation6 + $0x138] sm:$0xf]
    %v2118 = vld [vmem:[#allocation6 + $0x13c] sm:$0xf]
    %v2119 = vld [vmem:[#allocation6 + $0x140] sm:$0xf]
    %v2120 = vld [vmem:[#allocation6 + $0x144] sm:$0xf]
    %v2121 = vld [vmem:[#allocation6 + $0x148] sm:$0xf]
    %v2122 = vld [vmem:[#allocation6 + $0x14c] sm:$0xf]
    %v2123 = vld [vmem:[#allocation6 + $0x150] sm:$0xf]
    %v2124 = vld [vmem:[#allocation6 + $0x154] sm:$0xf]
    %v2125 = vld [vmem:[#allocation6 + $0x158] sm:$0xf]
    %v2126 = vld [vmem:[#allocation6 + $0x15c] sm:$0xf]
    %v2127 = vld [vmem:[#allocation6 + $0x160] sm:$0xf]
    %v2128 = vld [vmem:[#allocation6 + $0x164] sm:$0xf]
    %v2129 = vld [vmem:[#allocation6 + $0x168] sm:$0xf]
    %v2130 = vld [vmem:[#allocation6 + $0x16c] sm:$0xf]
    %v2131 = vld [vmem:[#allocation6 + $0x170] sm:$0xf]
    %v2132 = vld [vmem:[#allocation6 + $0x174] sm:$0xf]
    %v2133 = vld [vmem:[#allocation6 + $0x178] sm:$0xf]
    %v2134 = vld [vmem:[#allocation6 + $0x17c] sm:$0xf]
    %v2135 = vld [vmem:[%s8] sm:$0x1]
    %v2137 = vlaneseq
    %v2138 = vshrl.u32 %v2137, 7
    %v2139 = vsub.s32 0, %v2138
    %v2140 = vrot.slane %v2135, %v2139
    %v2145 = vunpack.c.l.b16 %v2036
    %v2146 = vunpack.c.h.b16 %v2036
    %v2147 = vunpack.c.l.b16 %v2037
    %v2148 = vunpack.c.h.b16 %v2037
    %v2149 = vunpack.c.l.b16 %v2038
    %v2150 = vunpack.c.h.b16 %v2038
    %v2151 = vpack.c.b16 %v2145, %v2145
    %v2152 = vpack.c.b16 %v2146, %v2146
    %v2153 = vpack.c.b16 %v2147, %v2147
    %v2154 = vpack.c.b16 %v2148, %v2148
    %v2155 = vpack.c.b16 %v2149, %v2149
    %v2156 = vpack.c.b16 %v2150, %v2150
    %v2259 = vunpack.c.l.b16 %v2039
    %v2260 = vunpack.c.l.b16 %v2040
    %v2261 = vunpack.c.l.b16 %v2041
    %v2262 = vunpack.c.l.b16 %v2042
    %v2263 = vunpack.c.l.b16 %v2043
    %v2264 = vunpack.c.l.b16 %v2044
    %v2265 = vunpack.c.l.b16 %v2045
    %v2266 = vunpack.c.l.b16 %v2046
    %v2267 = vunpack.c.l.b16 %v2047
    %v2268 = vunpack.c.l.b16 %v2048
    %v2269 = vunpack.c.l.b16 %v2049
    %v2270 = vunpack.c.l.b16 %v2050
    %v2271 = vunpack.c.l.b16 %v2051
    %v2272 = vunpack.c.l.b16 %v2052
    %v2273 = vunpack.c.l.b16 %v2053
    %v2274 = vunpack.c.l.b16 %v2054
    %v2275 = vunpack.c.l.b16 %v2055
    %v2276 = vunpack.c.l.b16 %v2056
    %v2277 = vunpack.c.l.b16 %v2057
    %v2278 = vunpack.c.l.b16 %v2058
    %v2279 = vunpack.c.l.b16 %v2059
    %v2280 = vunpack.c.l.b16 %v2060
    %v2281 = vunpack.c.l.b16 %v2061
    %v2282 = vunpack.c.l.b16 %v2062
    %v2283 = vunpack.c.l.b16 %v2063
    %v2284 = vunpack.c.l.b16 %v2064
    %v2285 = vunpack.c.l.b16 %v2065
    %v2286 = vunpack.c.l.b16 %v2066
    %v2287 = vunpack.c.l.b16 %v2067
    %v2288 = vunpack.c.l.b16 %v2068
    %v2289 = vunpack.c.l.b16 %v2069
    %v2290 = vunpack.c.l.b16 %v2070
    %v2291 = vunpack.c.l.b16 %v2071
    %v2292 = vunpack.c.l.b16 %v2072
    %v2293 = vunpack.c.l.b16 %v2073
    %v2294 = vunpack.c.l.b16 %v2074
    %v2295 = vunpack.c.l.b16 %v2075
    %v2296 = vunpack.c.l.b16 %v2076
    %v2297 = vunpack.c.l.b16 %v2077
    %v2298 = vunpack.c.l.b16 %v2078
    %v2299 = vunpack.c.l.b16 %v2079
    %v2300 = vunpack.c.l.b16 %v2080
    %v2301 = vunpack.c.l.b16 %v2081
    %v2302 = vunpack.c.l.b16 %v2082
    %v2303 = vunpack.c.l.b16 %v2083
    %v2304 = vunpack.c.l.b16 %v2084
    %v2305 = vunpack.c.l.b16 %v2085
    %v2306 = vunpack.c.l.b16 %v2086
    %v2307 = vunpack.c.l.b16 %v2087
    %v2308 = vunpack.c.l.b16 %v2088
    %v2309 = vunpack.c.l.b16 %v2089
    %v2310 = vunpack.c.l.b16 %v2090
    %v2311 = vunpack.c.l.b16 %v2091
    %v2312 = vunpack.c.l.b16 %v2092
    %v2313 = vunpack.c.l.b16 %v2093
    %v2314 = vunpack.c.l.b16 %v2094
    %v2315 = vunpack.c.l.b16 %v2095
    %v2316 = vunpack.c.l.b16 %v2096
    %v2317 = vunpack.c.l.b16 %v2097
    %v2318 = vunpack.c.l.b16 %v2098
    %v2319 = vunpack.c.l.b16 %v2099
    %v2320 = vunpack.c.l.b16 %v2100
    %v2321 = vunpack.c.l.b16 %v2101
    %v2322 = vunpack.c.l.b16 %v2102
    %v2323 = vunpack.c.l.b16 %v2103
    %v2324 = vunpack.c.l.b16 %v2104
    %v2325 = vunpack.c.l.b16 %v2105
    %v2326 = vunpack.c.l.b16 %v2106
    %v2327 = vunpack.c.l.b16 %v2107
    %v2328 = vunpack.c.l.b16 %v2108
    %v2329 = vunpack.c.l.b16 %v2109
    %v2330 = vunpack.c.l.b16 %v2110
    %v2331 = vunpack.c.l.b16 %v2111
    %v2332 = vunpack.c.l.b16 %v2112
    %v2333 = vunpack.c.l.b16 %v2113
    %v2334 = vunpack.c.l.b16 %v2114
    %v2335 = vunpack.c.l.b16 %v2115
    %v2336 = vunpack.c.l.b16 %v2116
    %v2337 = vunpack.c.l.b16 %v2117
    %v2338 = vunpack.c.l.b16 %v2118
    %v2339 = vunpack.c.l.b16 %v2119
    %v2340 = vunpack.c.l.b16 %v2120
    %v2341 = vunpack.c.l.b16 %v2121
    %v2342 = vunpack.c.l.b16 %v2122
    %v2343 = vunpack.c.l.b16 %v2123
    %v2344 = vunpack.c.l.b16 %v2124
    %v2345 = vunpack.c.l.b16 %v2125
    %v2346 = vunpack.c.l.b16 %v2126
    %v2347 = vunpack.c.l.b16 %v2127
    %v2348 = vunpack.c.l.b16 %v2128
    %v2349 = vunpack.c.l.b16 %v2129
    %v2350 = vunpack.c.l.b16 %v2130
    %v2351 = vunpack.c.l.b16 %v2131
    %v2352 = vunpack.c.l.b16 %v2132
    %v2353 = vunpack.c.l.b16 %v2133
    %v2354 = vunpack.c.l.b16 %v2134
    %v2355 = vpack.c.b16 %v2260, %v2259
    %v2356 = vpack.c.b16 %v2262, %v2261
    %v2357 = vpack.c.b16 %v2264, %v2263
    %v2358 = vpack.c.b16 %v2266, %v2265
    %v2359 = vpack.c.b16 %v2268, %v2267
    %v2360 = vpack.c.b16 %v2270, %v2269
    %v2361 = vpack.c.b16 %v2272, %v2271
    %v2362 = vpack.c.b16 %v2274, %v2273
    %v2363 = vpack.c.b16 %v2276, %v2275
    %v2364 = vpack.c.b16 %v2278, %v2277
    %v2365 = vpack.c.b16 %v2280, %v2279
    %v2366 = vpack.c.b16 %v2282, %v2281
    %v2367 = vpack.c.b16 %v2284, %v2283
    %v2368 = vpack.c.b16 %v2286, %v2285
    %v2369 = vpack.c.b16 %v2288, %v2287
    %v2370 = vpack.c.b16 %v2290, %v2289
    %v2371 = vpack.c.b16 %v2292, %v2291
    %v2372 = vpack.c.b16 %v2294, %v2293
    %v2373 = vpack.c.b16 %v2296, %v2295
    %v2374 = vpack.c.b16 %v2298, %v2297
    %v2375 = vpack.c.b16 %v2300, %v2299
    %v2376 = vpack.c.b16 %v2302, %v2301
    %v2377 = vpack.c.b16 %v2304, %v2303
    %v2378 = vpack.c.b16 %v2306, %v2305
    %v2379 = vpack.c.b16 %v2308, %v2307
    %v2380 = vpack.c.b16 %v2310, %v2309
    %v2381 = vpack.c.b16 %v2312, %v2311
    %v2382 = vpack.c.b16 %v2314, %v2313
    %v2383 = vpack.c.b16 %v2316, %v2315
    %v2384 = vpack.c.b16 %v2318, %v2317
    %v2385 = vpack.c.b16 %v2320, %v2319
    %v2386 = vpack.c.b16 %v2322, %v2321
    %v2387 = vpack.c.b16 %v2324, %v2323
    %v2388 = vpack.c.b16 %v2326, %v2325
    %v2389 = vpack.c.b16 %v2328, %v2327
    %v2390 = vpack.c.b16 %v2330, %v2329
    %v2391 = vpack.c.b16 %v2332, %v2331
    %v2392 = vpack.c.b16 %v2334, %v2333
    %v2393 = vpack.c.b16 %v2336, %v2335
    %v2394 = vpack.c.b16 %v2338, %v2337
    %v2395 = vpack.c.b16 %v2340, %v2339
    %v2396 = vpack.c.b16 %v2342, %v2341
    %v2397 = vpack.c.b16 %v2344, %v2343
    %v2398 = vpack.c.b16 %v2346, %v2345
    %v2399 = vpack.c.b16 %v2348, %v2347
    %v2400 = vpack.c.b16 %v2350, %v2349
    %v2401 = vpack.c.b16 %v2352, %v2351
    %v2402 = vpack.c.b16 %v2354, %v2353
    %2451 = vmatprep.subr.bf16.mxu0 0
    %2452 = vmatpush1.bf16.msra.mxu0 %v2362
    %2453 = vmatprep.subr.bf16.mxu0 0
    %2454 = vmatpush1.bf16.msra.mxu0 %v2361
    %2455 = vmatprep.subr.bf16.mxu0 0
    %2456 = vmatpush1.bf16.msra.mxu0 %v2360
    %2457 = vmatprep.subr.bf16.mxu0 0
    %2458 = vmatpush1.bf16.msra.mxu0 %v2359
    %2459 = vmatprep.subr.bf16.mxu0 0
    %2460 = vmatpush1.bf16.msra.mxu0 %v2358
    %2461 = vmatprep.subr.bf16.mxu0 0
    %2462 = vmatpush1.bf16.msra.mxu0 %v2357
    %2463 = vmatprep.subr.bf16.mxu0 0
    %2464 = vmatpush1.bf16.msra.mxu0 %v2356
    %2465 = vmatprep.subr.bf16.mxu0 0
    %2466 = vmatpush1.bf16.msra.mxu0 %v2355
    %2467 = vmatprep.subr.bf16.mxu0 0
    %2468 = vmatpush2.bf16.msra.mxu0 %v2370
    %2469 = vmatprep.subr.bf16.mxu0 0
    %2470 = vmatpush2.bf16.msra.mxu0 %v2369
    %2471 = vmatprep.subr.bf16.mxu0 0
    %2472 = vmatpush2.bf16.msra.mxu0 %v2368
    %2473 = vmatprep.subr.bf16.mxu0 0
    %2474 = vmatpush2.bf16.msra.mxu0 %v2367
    %2475 = vmatprep.subr.bf16.mxu0 0
    %2476 = vmatpush2.bf16.msra.mxu0 %v2366
    %2477 = vmatprep.subr.bf16.mxu0 0
    %2478 = vmatpush2.bf16.msra.mxu0 %v2365
    %2479 = vmatprep.subr.bf16.mxu0 0
    %2480 = vmatpush2.bf16.msra.mxu0 %v2364
    %2481 = vmatprep.subr.bf16.mxu0 0
    %2482 = vmatpush2.bf16.msra.mxu0 %v2363
    %2483 = vmatprep.mubr.bf16.mxu0 %v2152
    %2484 = vmatmul.mubr.bf16.gmra.mxu0 %v2151
    %v2485 = vpop.f32.mrf.mxu0
    %v2486 = vadd.f32 %v2140, %v2485
    %v2487 = vpop.f32.mrf.mxu0
    %v2488 = vpop.f32.mrf.mxu0
    %v2489 = vpop.f32.mrf.mxu0
    %2490 = vdwg.mxu0
    %2491 = vmatprep.subr.bf16.mxu0 0
    %2492 = vmatpush1.bf16.msra.mxu0 %v2378
    %2493 = vmatprep.subr.bf16.mxu0 0
    %2494 = vmatpush1.bf16.msra.mxu0 %v2377
    %2495 = vmatprep.subr.bf16.mxu0 0
    %2496 = vmatpush1.bf16.msra.mxu0 %v2376
    %2497 = vmatprep.subr.bf16.mxu0 0
    %2498 = vmatpush1.bf16.msra.mxu0 %v2375
    %2499 = vmatprep.subr.bf16.mxu0 0
    %2500 = vmatpush1.bf16.msra.mxu0 %v2374
    %2501 = vmatprep.subr.bf16.mxu0 0
    %2502 = vmatpush1.bf16.msra.mxu0 %v2373
    %2503 = vmatprep.subr.bf16.mxu0 0
    %2504 = vmatpush1.bf16.msra.mxu0 %v2372
    %2505 = vmatprep.subr.bf16.mxu0 0
    %2506 = vmatpush1.bf16.msra.mxu0 %v2371
    %2507 = vmatprep.subr.bf16.mxu0 0
    %2508 = vmatpush2.bf16.msra.mxu0 %v2386
    %2509 = vmatprep.subr.bf16.mxu0 0
    %2510 = vmatpush2.bf16.msra.mxu0 %v2385
    %2511 = vmatprep.subr.bf16.mxu0 0
    %2512 = vmatpush2.bf16.msra.mxu0 %v2384
    %2513 = vmatprep.subr.bf16.mxu0 0
    %2514 = vmatpush2.bf16.msra.mxu0 %v2383
    %2515 = vmatprep.subr.bf16.mxu0 0
    %2516 = vmatpush2.bf16.msra.mxu0 %v2382
    %2517 = vmatprep.subr.bf16.mxu0 0
    %2518 = vmatpush2.bf16.msra.mxu0 %v2381
    %2519 = vmatprep.subr.bf16.mxu0 0
    %2520 = vmatpush2.bf16.msra.mxu0 %v2380
    %2521 = vmatprep.subr.bf16.mxu0 0
    %2522 = vmatpush2.bf16.msra.mxu0 %v2379
    %2523 = vmatprep.mubr.bf16.mxu0 %v2154
    %2524 = vmatmul.mubr.bf16.gmra.mxu0 %v2153
    %v2525 = vpop.f32.mrf.mxu0
    %v2526 = vadd.f32 %v2486, %v2525
    %v2527 = vpop.f32.mrf.mxu0
    %v2528 = vpop.f32.mrf.mxu0
    %v2529 = vpop.f32.mrf.mxu0
    %2530 = vdwg.mxu0
    %2531 = vmatprep.subr.bf16.mxu0 0
    %2532 = vmatpush1.bf16.msra.mxu0 %v2394
    %2533 = vmatprep.subr.bf16.mxu0 0
    %2534 = vmatpush1.bf16.msra.mxu0 %v2393
    %2535 = vmatprep.subr.bf16.mxu0 0
    %2536 = vmatpush1.bf16.msra.mxu0 %v2392
    %2537 = vmatprep.subr.bf16.mxu0 0
    %2538 = vmatpush1.bf16.msra.mxu0 %v2391
    %2539 = vmatprep.subr.bf16.mxu0 0
    %2540 = vmatpush1.bf16.msra.mxu0 %v2390
    %2541 = vmatprep.subr.bf16.mxu0 0
    %2542 = vmatpush1.bf16.msra.mxu0 %v2389
    %2543 = vmatprep.subr.bf16.mxu0 0
    %2544 = vmatpush1.bf16.msra.mxu0 %v2388
    %2545 = vmatprep.subr.bf16.mxu0 0
    %2546 = vmatpush1.bf16.msra.mxu0 %v2387
    %2547 = vmatprep.subr.bf16.mxu0 0
    %2548 = vmatpush2.bf16.msra.mxu0 %v2402
    %2549 = vmatprep.subr.bf16.mxu0 0
    %2550 = vmatpush2.bf16.msra.mxu0 %v2401
    %2551 = vmatprep.subr.bf16.mxu0 0
    %2552 = vmatpush2.bf16.msra.mxu0 %v2400
    %2553 = vmatprep.subr.bf16.mxu0 0
    %2554 = vmatpush2.bf16.msra.mxu0 %v2399
    %2555 = vmatprep.subr.bf16.mxu0 0
    %2556 = vmatpush2.bf16.msra.mxu0 %v2398
    %2557 = vmatprep.subr.bf16.mxu0 0
    %2558 = vmatpush2.bf16.msra.mxu0 %v2397
    %2559 = vmatprep.subr.bf16.mxu0 0
    %2560 = vmatpush2.bf16.msra.mxu0 %v2396
    %2561 = vmatprep.subr.bf16.mxu0 0
    %2562 = vmatpush2.bf16.msra.mxu0 %v2395
    %2563 = vmatprep.mubr.bf16.mxu0 %v2156
    %2564 = vmatmul.mubr.bf16.gmra.mxu0 %v2155
    %v2565 = vpop.f32.mrf.mxu0
    %v2566 = vadd.f32 %v2526, %v2565
    %v2567 = vpop.f32.mrf.mxu0
    %v2568 = vpop.f32.mrf.mxu0
    %v2569 = vpop.f32.mrf.mxu0
    %2570 = vdwg.mxu0
    %v2571 = vpack.c.bf16 %v1496, %v1496
    %v2572 = vld [vmem:[%s9] sm:$0xf]
    %v2573 = vld [vmem:[%s9 + $0x4] sm:$0xf]
    %v2574 = vld [vmem:[%s9 + $0x8] sm:$0xf]
    %v2575 = vld [vmem:[%s9 + $0xc] sm:$0xf]
    %v2576 = vld [vmem:[%s9 + $0x10] sm:$0xf]
    %v2577 = vld [vmem:[%s9 + $0x14] sm:$0xf]
    %v2578 = vld [vmem:[%s9 + $0x18] sm:$0xf]
    %v2579 = vld [vmem:[%s9 + $0x1c] sm:$0xf]
    %v2580 = vld [vmem:[%s9 + $0x20] sm:$0xf]
    %v2581 = vld [vmem:[%s9 + $0x24] sm:$0xf]
    %v2582 = vld [vmem:[%s9 + $0x28] sm:$0xf]
    %v2583 = vld [vmem:[%s9 + $0x2c] sm:$0xf]
    %v2584 = vld [vmem:[%s9 + $0x30] sm:$0xf]
    %v2585 = vld [vmem:[%s9 + $0x34] sm:$0xf]
    %v2586 = vld [vmem:[%s9 + $0x38] sm:$0xf]
    %v2587 = vld [vmem:[%s9 + $0x3c] sm:$0xf]
    %v2588 = vpack.c.bf16 %v2031, %v2031
    %v2589 = vld [vmem:[%s10] sm:$0xf]
    %v2590 = vld [vmem:[%s10 + $0x4] sm:$0xf]
    %v2591 = vld [vmem:[%s10 + $0x8] sm:$0xf]
    %v2592 = vld [vmem:[%s10 + $0xc] sm:$0xf]
    %v2593 = vld [vmem:[%s10 + $0x10] sm:$0xf]
    %v2594 = vld [vmem:[%s10 + $0x14] sm:$0xf]
    %v2595 = vld [vmem:[%s10 + $0x18] sm:$0xf]
    %v2596 = vld [vmem:[%s10 + $0x1c] sm:$0xf]
    %v2597 = vld [vmem:[%s10 + $0x20] sm:$0xf]
    %v2598 = vld [vmem:[%s10 + $0x24] sm:$0xf]
    %v2599 = vld [vmem:[%s10 + $0x28] sm:$0xf]
    %v2600 = vld [vmem:[%s10 + $0x2c] sm:$0xf]
    %v2601 = vld [vmem:[%s10 + $0x30] sm:$0xf]
    %v2602 = vld [vmem:[%s10 + $0x34] sm:$0xf]
    %v2603 = vld [vmem:[%s10 + $0x38] sm:$0xf]
    %v2604 = vld [vmem:[%s10 + $0x3c] sm:$0xf]
    %v2621 = vunpack.c.l.b16 %v2589
    %v2622 = vunpack.c.l.b16 %v2590
    %v2623 = vunpack.c.l.b16 %v2591
    %v2624 = vunpack.c.l.b16 %v2592
    %v2625 = vunpack.c.l.b16 %v2593
    %v2626 = vunpack.c.l.b16 %v2594
    %v2627 = vunpack.c.l.b16 %v2595
    %v2628 = vunpack.c.l.b16 %v2596
    %v2629 = vunpack.c.l.b16 %v2597
    %v2630 = vunpack.c.l.b16 %v2598
    %v2631 = vunpack.c.l.b16 %v2599
    %v2632 = vunpack.c.l.b16 %v2600
    %v2633 = vunpack.c.l.b16 %v2601
    %v2634 = vunpack.c.l.b16 %v2602
    %v2635 = vunpack.c.l.b16 %v2603
    %v2636 = vunpack.c.l.b16 %v2604
    %v2637 = vpack.c.b16 %v2622, %v2621
    %v2638 = vpack.c.b16 %v2624, %v2623
    %v2639 = vpack.c.b16 %v2626, %v2625
    %v2640 = vpack.c.b16 %v2628, %v2627
    %v2641 = vpack.c.b16 %v2630, %v2629
    %v2642 = vpack.c.b16 %v2632, %v2631
    %v2643 = vpack.c.b16 %v2634, %v2633
    %v2644 = vpack.c.b16 %v2636, %v2635
    %2653 = vmatprep.subr.bf16.mxu0 0
    %2654 = vmatpush1.bf16.msra.mxu0 %v2644
    %2655 = vmatprep.subr.bf16.mxu0 0
    %2656 = vmatpush1.bf16.msra.mxu0 %v2643
    %2657 = vmatprep.subr.bf16.mxu0 0
    %2658 = vmatpush1.bf16.msra.mxu0 %v2642
    %2659 = vmatprep.subr.bf16.mxu0 0
    %2660 = vmatpush1.bf16.msra.mxu0 %v2641
    %2661 = vmatprep.subr.bf16.mxu0 0
    %2662 = vmatpush1.bf16.msra.mxu0 %v2640
    %2663 = vmatprep.subr.bf16.mxu0 0
    %2664 = vmatpush1.bf16.msra.mxu0 %v2639
    %2665 = vmatprep.subr.bf16.mxu0 0
    %2666 = vmatpush1.bf16.msra.mxu0 %v2638
    %2667 = vmatprep.subr.bf16.mxu0 0
    %2668 = vmatpush1.bf16.msra.mxu0 %v2637
    %2669 = vmatprep.subr.bf16.mxu0 0
    %2670 = vmatpush2.bf16.msra.mxu0 0
    %2671 = vmatprep.subr.bf16.mxu0 0
    %2672 = vmatpush2.bf16.msra.mxu0 0
    %2673 = vmatprep.subr.bf16.mxu0 0
    %2674 = vmatpush2.bf16.msra.mxu0 0
    %2675 = vmatprep.subr.bf16.mxu0 0
    %2676 = vmatpush2.bf16.msra.mxu0 0
    %2677 = vmatprep.subr.bf16.mxu0 0
    %2678 = vmatpush2.bf16.msra.mxu0 0
    %2679 = vmatprep.subr.bf16.mxu0 0
    %2680 = vmatpush2.bf16.msra.mxu0 0
    %2681 = vmatprep.subr.bf16.mxu0 0
    %2682 = vmatpush2.bf16.msra.mxu0 0
    %2683 = vmatprep.subr.bf16.mxu0 0
    %2684 = vmatpush2.bf16.msra.mxu0 0
    %2685 = vmatprep.mubr.bf16.mxu0 0
    %2686 = vmatmul.mubr.bf16.gmra.mxu0 %v2588
    %v2687 = vpop.f32.mrf.mxu0
    %v2688 = vadd.f32 0.0, %v2687
    %v2689 = vpop.f32.mrf.mxu0
    %v2690 = vpop.f32.mrf.mxu0
    %v2691 = vpop.f32.mrf.mxu0
    %2692 = vdwg.mxu0
    %v2709 = vunpack.c.l.b16 %v2572
    %v2710 = vunpack.c.l.b16 %v2573
    %v2711 = vunpack.c.l.b16 %v2574
    %v2712 = vunpack.c.l.b16 %v2575
    %v2713 = vunpack.c.l.b16 %v2576
    %v2714 = vunpack.c.l.b16 %v2577
    %v2715 = vunpack.c.l.b16 %v2578
    %v2716 = vunpack.c.l.b16 %v2579
    %v2717 = vunpack.c.l.b16 %v2580
    %v2718 = vunpack.c.l.b16 %v2581
    %v2719 = vunpack.c.l.b16 %v2582
    %v2720 = vunpack.c.l.b16 %v2583
    %v2721 = vunpack.c.l.b16 %v2584
    %v2722 = vunpack.c.l.b16 %v2585
    %v2723 = vunpack.c.l.b16 %v2586
    %v2724 = vunpack.c.l.b16 %v2587
    %v2725 = vpack.c.b16 %v2710, %v2709
    %v2726 = vpack.c.b16 %v2712, %v2711
    %v2727 = vpack.c.b16 %v2714, %v2713
    %v2728 = vpack.c.b16 %v2716, %v2715
    %v2729 = vpack.c.b16 %v2718, %v2717
    %v2730 = vpack.c.b16 %v2720, %v2719
    %v2731 = vpack.c.b16 %v2722, %v2721
    %v2732 = vpack.c.b16 %v2724, %v2723
    %2741 = vmatprep.subr.bf16.mxu0 0
    %2742 = vmatpush1.bf16.msra.mxu0 %v2732
    %2743 = vmatprep.subr.bf16.mxu0 0
    %2744 = vmatpush1.bf16.msra.mxu0 %v2731
    %2745 = vmatprep.subr.bf16.mxu0 0
    %2746 = vmatpush1.bf16.msra.mxu0 %v2730
    %2747 = vmatprep.subr.bf16.mxu0 0
    %2748 = vmatpush1.bf16.msra.mxu0 %v2729
    %2749 = vmatprep.subr.bf16.mxu0 0
    %2750 = vmatpush1.bf16.msra.mxu0 %v2728
    %2751 = vmatprep.subr.bf16.mxu0 0
    %2752 = vmatpush1.bf16.msra.mxu0 %v2727
    %2753 = vmatprep.subr.bf16.mxu0 0
    %2754 = vmatpush1.bf16.msra.mxu0 %v2726
    %2755 = vmatprep.subr.bf16.mxu0 0
    %2756 = vmatpush1.bf16.msra.mxu0 %v2725
    %2757 = vmatprep.subr.bf16.mxu0 0
    %2758 = vmatpush2.bf16.msra.mxu0 0
    %2759 = vmatprep.subr.bf16.mxu0 0
    %2760 = vmatpush2.bf16.msra.mxu0 0
    %2761 = vmatprep.subr.bf16.mxu0 0
    %2762 = vmatpush2.bf16.msra.mxu0 0
    %2763 = vmatprep.subr.bf16.mxu0 0
    %2764 = vmatpush2.bf16.msra.mxu0 0
    %2765 = vmatprep.subr.bf16.mxu0 0
    %2766 = vmatpush2.bf16.msra.mxu0 0
    %2767 = vmatprep.subr.bf16.mxu0 0
    %2768 = vmatpush2.bf16.msra.mxu0 0
    %2769 = vmatprep.subr.bf16.mxu0 0
    %2770 = vmatpush2.bf16.msra.mxu0 0
    %2771 = vmatprep.subr.bf16.mxu0 0
    %2772 = vmatpush2.bf16.msra.mxu0 0
    %2773 = vmatprep.mubr.bf16.mxu0 0
    %2774 = vmatmul.mubr.bf16.gmra.mxu0 %v2571
    %v2775 = vpop.f32.mrf.mxu0
    %v2776 = vadd.f32 %v2688, %v2775
    %v2777 = vpop.f32.mrf.mxu0
    %v2778 = vpop.f32.mrf.mxu0
    %v2779 = vpop.f32.mrf.mxu0
    %2780 = vdwg.mxu0
    %v2781 = vpack.c.bf16 %v2566, %v2566
    %v2782 = vld [vmem:[%s11] sm:$0xf]
    %v2783 = vld [vmem:[%s11 + $0x4] sm:$0xf]
    %v2784 = vld [vmem:[%s11 + $0x8] sm:$0xf]
    %v2785 = vld [vmem:[%s11 + $0xc] sm:$0xf]
    %v2786 = vld [vmem:[%s11 + $0x10] sm:$0xf]
    %v2787 = vld [vmem:[%s11 + $0x14] sm:$0xf]
    %v2788 = vld [vmem:[%s11 + $0x18] sm:$0xf]
    %v2789 = vld [vmem:[%s11 + $0x1c] sm:$0xf]
    %v2790 = vld [vmem:[%s11 + $0x20] sm:$0xf]
    %v2791 = vld [vmem:[%s11 + $0x24] sm:$0xf]
    %v2792 = vld [vmem:[%s11 + $0x28] sm:$0xf]
    %v2793 = vld [vmem:[%s11 + $0x2c] sm:$0xf]
    %v2794 = vld [vmem:[%s11 + $0x30] sm:$0xf]
    %v2795 = vld [vmem:[%s11 + $0x34] sm:$0xf]
    %v2796 = vld [vmem:[%s11 + $0x38] sm:$0xf]
    %v2797 = vld [vmem:[%s11 + $0x3c] sm:$0xf]
    %v2814 = vunpack.c.l.b16 %v2782
    %v2815 = vunpack.c.l.b16 %v2783
    %v2816 = vunpack.c.l.b16 %v2784
    %v2817 = vunpack.c.l.b16 %v2785
    %v2818 = vunpack.c.l.b16 %v2786
    %v2819 = vunpack.c.l.b16 %v2787
    %v2820 = vunpack.c.l.b16 %v2788
    %v2821 = vunpack.c.l.b16 %v2789
    %v2822 = vunpack.c.l.b16 %v2790
    %v2823 = vunpack.c.l.b16 %v2791
    %v2824 = vunpack.c.l.b16 %v2792
    %v2825 = vunpack.c.l.b16 %v2793
    %v2826 = vunpack.c.l.b16 %v2794
    %v2827 = vunpack.c.l.b16 %v2795
    %v2828 = vunpack.c.l.b16 %v2796
    %v2829 = vunpack.c.l.b16 %v2797
    %v2830 = vpack.c.b16 %v2815, %v2814
    %v2831 = vpack.c.b16 %v2817, %v2816
    %v2832 = vpack.c.b16 %v2819, %v2818
    %v2833 = vpack.c.b16 %v2821, %v2820
    %v2834 = vpack.c.b16 %v2823, %v2822
    %v2835 = vpack.c.b16 %v2825, %v2824
    %v2836 = vpack.c.b16 %v2827, %v2826
    %v2837 = vpack.c.b16 %v2829, %v2828
    %2846 = vmatprep.subr.bf16.mxu0 0
    %2847 = vmatpush1.bf16.msra.mxu0 %v2837
    %2848 = vmatprep.subr.bf16.mxu0 0
    %2849 = vmatpush1.bf16.msra.mxu0 %v2836
    %2850 = vmatprep.subr.bf16.mxu0 0
    %2851 = vmatpush1.bf16.msra.mxu0 %v2835
    %2852 = vmatprep.subr.bf16.mxu0 0
    %2853 = vmatpush1.bf16.msra.mxu0 %v2834
    %2854 = vmatprep.subr.bf16.mxu0 0
    %2855 = vmatpush1.bf16.msra.mxu0 %v2833
    %2856 = vmatprep.subr.bf16.mxu0 0
    %2857 = vmatpush1.bf16.msra.mxu0 %v2832
    %2858 = vmatprep.subr.bf16.mxu0 0
    %2859 = vmatpush1.bf16.msra.mxu0 %v2831
    %2860 = vmatprep.subr.bf16.mxu0 0
    %2861 = vmatpush1.bf16.msra.mxu0 %v2830
    %2862 = vmatprep.subr.bf16.mxu0 0
    %2863 = vmatpush2.bf16.msra.mxu0 0
    %2864 = vmatprep.subr.bf16.mxu0 0
    %2865 = vmatpush2.bf16.msra.mxu0 0
    %2866 = vmatprep.subr.bf16.mxu0 0
    %2867 = vmatpush2.bf16.msra.mxu0 0
    %2868 = vmatprep.subr.bf16.mxu0 0
    %2869 = vmatpush2.bf16.msra.mxu0 0
    %2870 = vmatprep.subr.bf16.mxu0 0
    %2871 = vmatpush2.bf16.msra.mxu0 0
    %2872 = vmatprep.subr.bf16.mxu0 0
    %2873 = vmatpush2.bf16.msra.mxu0 0
    %2874 = vmatprep.subr.bf16.mxu0 0
    %2875 = vmatpush2.bf16.msra.mxu0 0
    %2876 = vmatprep.subr.bf16.mxu0 0
    %2877 = vmatpush2.bf16.msra.mxu0 0
    %2878 = vmatprep.mubr.bf16.mxu0 0
    %2879 = vmatmul.mubr.bf16.gmra.mxu0 %v2781
    %v2880 = vpop.f32.mrf.mxu0
    %v2881 = vadd.f32 0.0, %v2880
    %v2882 = vpop.f32.mrf.mxu0
    %v2883 = vpop.f32.mrf.mxu0
    %v2884 = vpop.f32.mrf.mxu0
    %2885 = vdwg.mxu0
    %v2886 = vadd.f32 %v2776, %v2881
    %v2887 = vld [vmem:[%s12] sm:$0x1]
    %v2889 = vlaneseq
    %v2890 = vshrl.u32 %v2889, 7
    %v2891 = vsub.s32 0, %v2890
    %v2892 = vrot.slane %v2887, %v2891
    %v2894 = vadd.f32 %v2886, %v2892
    %vm2895 = vcmask 15360
    %2896 = vst.msk [vmem:[%s13] sm:$0xff] %vm2895, %v2894
    // Predicated region
    $region66: #{tpu_custom_call.1} parent=1 // pred_check
      _
    $region67: #{tpu_custom_call.1} parent=1 // pred_check_branch
      %2898 = sbr.rel (0) target = $region69
    $region68: #{tpu_custom_call.1} parent=1 // pred_region
      _
    $region69: #{tpu_custom_call.1} parent=1 // pred_fallthru
      _
    // Predicated region
    $region70: #{tpu_custom_call.1} parent=1 // pred_check
      _
    $region71: #{tpu_custom_call.1} parent=1 // pred_check_branch
      %2900 = sbr.rel (0) target = $region73
    $region72: #{tpu_custom_call.1} parent=1 // pred_region
      _
    $region73: #{tpu_custom_call.1} parent=1 // pred_fallthru
      _
    %2901 = vsyncpa [#allocation3], 1
    %2902 = vsyncpa [#allocation5], 1

</llo_original>
